<compile_context>
chip_gen: v6e
topology: v6e:2x2x1
jax: 0.10.0
libtpu: 0.0.40
codegen_flags: <defaults>
</compile_context>

<pallas_src>
import jax
import jax.numpy as jnp
from jax import lax
from jax.experimental import pallas as pl
from jax.experimental.pallas import tpu as pltpu


_UNROLL_T = 32  # fully unroll the time loop when T <= this


# ----------------------------- fused encoder kernel ----------------------------- #
def _make_encoder_kernel(n_layers, T, Bp, E, H, drop_p, training):
    """Builds the fused (dropout + n_layers LSTM) kernel for a static configuration."""
    use_dropout = bool(training) and drop_p > 0.0
    keep_scale = 1.0 / (1.0 - drop_p) if use_dropout else 1.0

    def kernel(seed_ref, x_ref, *rest):
        # rest = wih_0, whh_0, b_0, ..., wih_{L-1}, whh_{L-1}, b_{L-1},
        #        h_out_ref, c_out_ref, xw_sc, y_sc, h_sc, c_sc
        w_refs = rest[: 3 * n_layers]
        h_out_ref = rest[3 * n_layers]
        c_out_ref = rest[3 * n_layers + 1]
        xw_sc, y_sc, h_sc, c_sc = rest[3 * n_layers + 2:]

        def apply_dropout(x2d, layer_idx):
            # Inverted dropout; mask from a murmur-style hash of (flat index, seed).
            # TODO(synk): RNG stream is not bit-identical to torch.nn.Dropout.
            if not use_dropout:
                return x2d
            n, f = x2d.shape
            rows = lax.broadcasted_iota(jnp.int32, (n, f), 0).astype(jnp.uint32)
            cols = lax.broadcasted_iota(jnp.int32, (n, f), 1).astype(jnp.uint32)
            seed = seed_ref[layer_idx].astype(jnp.uint32)
            bits = rows * jnp.uint32(f) + cols + seed * jnp.uint32(0x9E3779B1)
            bits = bits ^ (bits >> 16)
            bits = bits * jnp.uint32(0x7FEB352D)
            bits = bits ^ (bits >> 15)
            bits = bits * jnp.uint32(0x846CA68B)
            bits = bits ^ (bits >> 16)
            u = (bits & jnp.uint32(0x7FFFFF)).astype(jnp.int32).astype(jnp.float32)
            u = u * jnp.float32(1.0 / (1 << 23))               # uniform [0, 1)
            keep = (u >= jnp.float32(drop_p)).astype(jnp.float32)
            return x2d * keep * jnp.float32(keep_scale)

        for l in range(n_layers):
            wih = w_refs[3 * l][...]       # [Din, 4H] bf16
            whh = w_refs[3 * l + 1][...]   # [H,   4H] bf16
            b = w_refs[3 * l + 2][...]     # [1,   4H] f32

            if l == 0:
                xin = x_ref[...].reshape(T * Bp, E)
            else:
                xin = y_sc[...].reshape(T * Bp, H)
            xin = apply_dropout(xin, l)    # embedding dropout (l==0) / inter-layer dropout

            # Hoisted input projection: one big MXU matmul for the whole sequence.
            xw = jnp.dot(xin.astype(jnp.bfloat16), wih,
                         preferred_element_type=jnp.float32) + b   # [T*Bp, 4H]
            xw = xw.reshape(T, Bp, 4 * H)

            def cell_step(xw_t, h_prev, c_prev):
                pre = xw_t + jnp.dot(h_prev.astype(jnp.bfloat16), whh,
                                     preferred_element_type=jnp.float32)  # [Bp, 4H]
                sig = jax.nn.sigmoid(pre)         # full-width EUP call, then slice gates
                i_g = sig[:, 0:H]
                f_g = sig[:, H:2 * H]
                o_g = sig[:, 3 * H:4 * H]
                g_g = jnp.tanh(pre[:, 2 * H:3 * H])
                c_new = f_g * c_prev + i_g * g_g
                h_new = o_g * jnp.tanh(c_new)
                return h_new, c_new

            if T <= _UNROLL_T:
                # Fully unrolled: h/c carried in vregs across timesteps.
                h = jnp.zeros((Bp, H), jnp.float32)
                c = jnp.zeros((Bp, H), jnp.float32)
                for t in range(T):
                    h, c = cell_step(xw[t], h, c)
                    if l < n_layers - 1:
                        y_sc[t] = h           # feeds the next layer
                h_out_ref[l] = h
                c_out_ref[l] = c
            else:
                xw_sc[...] = xw
                h_sc[...] = jnp.zeros_like(h_sc)
                c_sc[...] = jnp.zeros_like(c_sc)

                @pl.loop(0, T)
                def _(t):
                    h_new, c_new = cell_step(xw_sc[t], h_sc[...], c_sc[...])
                    h_sc[...] = h_new
                    c_sc[...] = c_new
                    if l < n_layers - 1:
                        y_sc[t] = h_new

                h_out_ref[l] = h_sc[...]
                c_out_ref[l] = c_sc[...]

    return kernel


# ------------------------------- wrapper / glue ---------------------------------- #
def encoder_forward(params, tokens, *, drop_p=0.5, training=True, seed=0):
    """Matches Encoder_with_dorpout.forward: returns (hidden_state, cells),
    each [n_layers, B, hidden_dim]."""
    if training:
        assert 0.0 <= drop_p < 1.0, "dropout prob must be in [0, 1) for training"

    # Embedding lookup (vocab gather) done with plain JAX indexing outside the kernel.
    x = params["embedding"][tokens].astype(jnp.float32)            # [T, B, E]
    T, B, E = x.shape
    layers = params["layers"]
    n_layers = len(layers)
    H = layers[0]["w_hh"].shape[1]

    Bp = ((B + 7) // 8) * 8                 # pad batch to the f32 sublane multiple
    if Bp != B:
        x = jnp.pad(x, ((0, 0), (0, Bp - B), (0, 0)))

    # One seed per dropout site (embedding dropout + input of layers 1..L-1).
    seeds = jnp.int32(seed) + jnp.arange(n_layers, dtype=jnp.int32) * jnp.int32(7919)

    args = [seeds, x]
    for lp in layers:
        args.append(lp["w_ih"].T.astype(jnp.bfloat16))              # [Din, 4H]
        args.append(lp["w_hh"].T.astype(jnp.bfloat16))              # [H,   4H]
        args.append((lp["b_ih"] + lp["b_hh"]).reshape(1, 4 * H).astype(jnp.float32))

    kernel = _make_encoder_kernel(n_layers, T, Bp, E, H, float(drop_p), bool(training))

    h_all, c_all = pl.pallas_call(
        kernel,
        out_shape=(jax.ShapeDtypeStruct((n_layers, Bp, H), jnp.float32),
                   jax.ShapeDtypeStruct((n_layers, Bp, H), jnp.float32)),
        in_specs=([pl.BlockSpec(memory_space=pltpu.MemorySpace.SMEM)]
                  + [pl.BlockSpec(memory_space=pltpu.MemorySpace.VMEM)] * (1 + 3 * n_layers)),
        out_specs=(pl.BlockSpec(memory_space=pltpu.MemorySpace.VMEM),
                   pl.BlockSpec(memory_space=pltpu.MemorySpace.VMEM)),
        scratch_shapes=[pltpu.VMEM((T, Bp, 4 * H), jnp.float32),   # xw_sc (pl.loop path)
                        pltpu.VMEM((T, Bp, H), jnp.float32),       # y_sc (inter-layer act.)
                        pltpu.VMEM((Bp, H), jnp.float32),          # h_sc
                        pltpu.VMEM((Bp, H), jnp.float32)],         # c_sc
    )(*args)
    return h_all[:, :B, :], c_all[:, :B, :]


def init_encoder_params(key, input_dim, embedding_dim, hidden_dim, n_layers):
    keys = jax.random.split(key, 1 + 4 * n_layers)
    params = {
        "embedding": jax.random.normal(keys[0], (input_dim, embedding_dim), jnp.float32),
        "layers": [],
    }
    k = 1.0 / (hidden_dim ** 0.5)
    for l in range(n_layers):
        in_dim = embedding_dim if l == 0 else hidden_dim
        kw = keys[1 + 4 * l: 1 + 4 * (l + 1)]
        params["layers"].append(dict(
            w_ih=jax.random.uniform(kw[0], (4 * hidden_dim, in_dim), jnp.float32, -k, k),
            w_hh=jax.random.uniform(kw[1], (4 * hidden_dim, hidden_dim), jnp.float32, -k, k),
            b_ih=jax.random.uniform(kw[2], (4 * hidden_dim,), jnp.float32, -k, k),
            b_hh=jax.random.uniform(kw[3], (4 * hidden_dim,), jnp.float32, -k, k),
        ))
    return params


def _encoder_reference(params, tokens):
    """Pure-JAX reference (eval mode, no dropout), f32 throughout."""
    x = params["embedding"][tokens].astype(jnp.float32)
    hs, cs = [], []
    for lp in params["layers"]:
        w_ih, w_hh = lp["w_ih"], lp["w_hh"]
        b = lp["b_ih"] + lp["b_hh"]
        H = w_hh.shape[1]
        T, B, _ = x.shape
        h = jnp.zeros((B, H), jnp.float32)
        c = jnp.zeros((B, H), jnp.float32)
        ys = []
        for t in range(T):
            pre = x[t] @ w_ih.T + h @ w_hh.T + b
            i = jax.nn.sigmoid(pre[:, 0:H])
            f = jax.nn.sigmoid(pre[:, H:2 * H])
            g = jnp.tanh(pre[:, 2 * H:3 * H])
            o = jax.nn.sigmoid(pre[:, 3 * H:4 * H])
            c = f * c + i * g
            h = o * jnp.tanh(c)
            ys.append(h)
        x = jnp.stack(ys, axis=0)
        hs.append(h)
        cs.append(c)
    return jnp.stack(hs, axis=0), jnp.stack(cs, axis=0)


if __name__ == "__main__":
    input_dim = 16        # vocab size
    embedding_dim = 32
    hidden_dim = 32
    n_layers = 2
    T, B = 8, 4           # seq_len, batch (seq-major, like nn.LSTM batch_first=False)

    key = jax.random.PRNGKey(0)
    k_tok, k_par = jax.random.split(key)
    tokens = jax.random.randint(k_tok, (T, B), 0, input_dim, dtype=jnp.int32)
    params = init_encoder_params(k_par, input_dim, embedding_dim, hidden_dim, n_layers)

    # Training-mode forward (embedding dropout + inter-layer dropout), as in the module.
    hidden_state, cells = encoder_forward(params, tokens, drop_p=0.5, training=True, seed=0)
    jax.block_until_ready((hidden_state, cells))
    assert hidden_state.shape == (n_layers, B, hidden_dim)
    assert cells.shape == (n_layers, B, hidden_dim)
    assert bool(jnp.all(jnp.isfinite(hidden_state))) and bool(jnp.all(jnp.isfinite(cells)))

    # Eval-mode forward is deterministic -> check against a pure-JAX reference.
    h_k, c_k = encoder_forward(params, tokens, training=False)
    h_r, c_r = _encoder_reference(params, tokens)
    jax.block_until_ready((h_k, c_k))
    err = max(float(jnp.max(jnp.abs(h_k - h_r))), float(jnp.max(jnp.abs(c_k - c_r))))
    assert err < 1e-1, f"mismatch vs pure-JAX reference: {err}"

    print("KERNEL_OK")
</pallas_src>

<mosaic_0001>
module attributes {stable_mosaic.version = 11 : i64} {
  func.func @kernel(%arg0: memref<2xi32, #tpu.memory_space<smem>>, %arg1: memref<8x8x32xf32, #tpu.memory_space<vmem>>, %arg2: memref<32x128xbf16, #tpu.memory_space<vmem>>, %arg3: memref<32x128xbf16, #tpu.memory_space<vmem>>, %arg4: memref<1x128xf32, #tpu.memory_space<vmem>>, %arg5: memref<32x128xbf16, #tpu.memory_space<vmem>>, %arg6: memref<32x128xbf16, #tpu.memory_space<vmem>>, %arg7: memref<1x128xf32, #tpu.memory_space<vmem>>, %arg8: memref<2x8x32xf32, #tpu.memory_space<vmem>>, %arg9: memref<2x8x32xf32, #tpu.memory_space<vmem>>, %arg10: memref<8x8x128xf32, #tpu.memory_space<vmem>>, %arg11: memref<8x8x32xf32, #tpu.memory_space<vmem>>, %arg12: memref<8x32xf32, #tpu.memory_space<vmem>>, %arg13: memref<8x32xf32, #tpu.memory_space<vmem>>) attributes {dimension_semantics = [], scalar_prefetch = 0 : i64, scratch_operands = 4 : i64, tpu.core_type = #tpu.core_type<tc>} {
    %c0 = arith.constant 0 : index
    %c0_0 = arith.constant 0 : index
    %0 = vector.load %arg2[%c0, %c0_0] : memref<32x128xbf16, #tpu.memory_space<vmem>>, vector<32x128xbf16>
    %c0_1 = arith.constant 0 : index
    %c0_2 = arith.constant 0 : index
    %1 = vector.load %arg3[%c0_1, %c0_2] : memref<32x128xbf16, #tpu.memory_space<vmem>>, vector<32x128xbf16>
    %c0_3 = arith.constant 0 : index
    %c0_4 = arith.constant 0 : index
    %2 = vector.load %arg4[%c0_3, %c0_4] : memref<1x128xf32, #tpu.memory_space<vmem>>, vector<1x128xf32>
    %c0_5 = arith.constant 0 : index
    %c0_6 = arith.constant 0 : index
    %c0_7 = arith.constant 0 : index
    %3 = vector.load %arg1[%c0_5, %c0_6, %c0_7] : memref<8x8x32xf32, #tpu.memory_space<vmem>>, vector<8x8x32xf32>
    %4 = vector.shape_cast %3 : vector<8x8x32xf32> to vector<64x32xf32>
    %5 = tpu.iota {dimensions = array<i32: 0>} : vector<64x32xi32>
    %6 = tpu.iota {dimensions = array<i32: 1>} : vector<64x32xi32>
    %c0_8 = arith.constant 0 : index
    %7 = memref.load %arg0[%c0_8] : memref<2xi32, #tpu.memory_space<smem>>
    %c32_i32 = arith.constant 32 : i32
    %8 = vector.broadcast %c32_i32 : i32 to vector<64x32xi32>
    %9 = arith.muli %5, %8 : vector<64x32xi32>
    %10 = arith.addi %9, %6 : vector<64x32xi32>
    %c-1640531535_i32 = arith.constant -1640531535 : i32
    %11 = arith.muli %7, %c-1640531535_i32 : i32
    %12 = vector.broadcast %11 : i32 to vector<64x32xi32>
    %13 = arith.addi %10, %12 : vector<64x32xi32>
    %c16_i32 = arith.constant 16 : i32
    %14 = vector.broadcast %c16_i32 : i32 to vector<64x32xi32>
    %15 = arith.shrui %13, %14 : vector<64x32xi32>
    %16 = arith.xori %13, %15 : vector<64x32xi32>
    %c2146121005_i32 = arith.constant 2146121005 : i32
    %17 = vector.broadcast %c2146121005_i32 : i32 to vector<64x32xi32>
    %18 = arith.muli %16, %17 : vector<64x32xi32>
    %c15_i32 = arith.constant 15 : i32
    %19 = vector.broadcast %c15_i32 : i32 to vector<64x32xi32>
    %20 = arith.shrui %18, %19 : vector<64x32xi32>
    %21 = arith.xori %18, %20 : vector<64x32xi32>
    %c-2073254261_i32 = arith.constant -2073254261 : i32
    %22 = vector.broadcast %c-2073254261_i32 : i32 to vector<64x32xi32>
    %23 = arith.muli %21, %22 : vector<64x32xi32>
    %c16_i32_9 = arith.constant 16 : i32
    %24 = vector.broadcast %c16_i32_9 : i32 to vector<64x32xi32>
    %25 = arith.shrui %23, %24 : vector<64x32xi32>
    %26 = arith.xori %23, %25 : vector<64x32xi32>
    %c8388607_i32 = arith.constant 8388607 : i32
    %27 = vector.broadcast %c8388607_i32 : i32 to vector<64x32xi32>
    %28 = arith.andi %26, %27 : vector<64x32xi32>
    %29 = arith.sitofp %28 : vector<64x32xi32> to vector<64x32xf32>
    %cst = arith.constant 1.1920929E-7 : f32
    %30 = vector.broadcast %cst : f32 to vector<64x32xf32>
    %31 = arith.mulf %29, %30 : vector<64x32xf32>
    %cst_10 = arith.constant 5.000000e-01 : f32
    %32 = vector.broadcast %cst_10 : f32 to vector<64x32xf32>
    %33 = arith.cmpf oge, %31, %32 : vector<64x32xf32>
    %34 = arith.extui %33 : vector<64x32xi1> to vector<64x32xi32>
    %35 = arith.sitofp %34 : vector<64x32xi32> to vector<64x32xf32>
    %36 = arith.mulf %4, %35 : vector<64x32xf32>
    %cst_11 = arith.constant 2.000000e+00 : f32
    %37 = vector.broadcast %cst_11 : f32 to vector<64x32xf32>
    %38 = arith.mulf %36, %37 : vector<64x32xf32>
    %39 = arith.truncf %38 : vector<64x32xf32> to vector<64x32xbf16>
    %cst_12 = arith.constant dense<0.000000e+00> : vector<64x128xf32>
    %40 = tpu.matmul %39, %0, %cst_12 {dimension_numbers = #tpu.dot_dimension_numbers<[1], [0], [0], [1], [0, 0, 1, 1], [], []>} : vector<64x32xbf16>, vector<32x128xbf16>, vector<64x128xf32> -> vector<64x128xf32>
    %41 = vector.broadcast %2 : vector<1x128xf32> to vector<64x128xf32>
    %42 = arith.addf %40, %41 : vector<64x128xf32>
    %43 = vector.shape_cast %42 : vector<64x128xf32> to vector<8x8x128xf32>
    %cst_13 = arith.constant 0.000000e+00 : f32
    %44 = vector.broadcast %cst_13 : f32 to vector<8x32xf32>
    %cst_14 = arith.constant 0.000000e+00 : f32
    %45 = vector.broadcast %cst_14 : f32 to vector<8x32xf32>
    %46 = vector.extract_strided_slice %43 {offsets = [0, 0, 0], sizes = [1, 8, 128], strides = [1, 1, 1]} : vector<8x8x128xf32> to vector<1x8x128xf32>
    %47 = vector.shape_cast %46 : vector<1x8x128xf32> to vector<8x128xf32>
    %48 = arith.truncf %44 : vector<8x32xf32> to vector<8x32xbf16>
    %cst_15 = arith.constant dense<0.000000e+00> : vector<8x128xf32>
    %49 = tpu.matmul %48, %1, %cst_15 {dimension_numbers = #tpu.dot_dimension_numbers<[1], [0], [0], [1], [0, 0, 1, 1], [], []>} : vector<8x32xbf16>, vector<32x128xbf16>, vector<8x128xf32> -> vector<8x128xf32>
    %50 = arith.addf %47, %49 : vector<8x128xf32>
    %51 = arith.negf %50 : vector<8x128xf32>
    %52 = math.exp %51 : vector<8x128xf32>
    %cst_16 = arith.constant 1.000000e+00 : f32
    %53 = vector.broadcast %cst_16 : f32 to vector<8x128xf32>
    %54 = arith.addf %53, %52 : vector<8x128xf32>
    %55 = arith.divf %53, %54 : vector<8x128xf32>
    %56 = vector.extract_strided_slice %55 {offsets = [0, 0], sizes = [8, 32], strides = [1, 1]} : vector<8x128xf32> to vector<8x32xf32>
    %57 = vector.extract_strided_slice %55 {offsets = [0, 32], sizes = [8, 32], strides = [1, 1]} : vector<8x128xf32> to vector<8x32xf32>
    %58 = vector.extract_strided_slice %55 {offsets = [0, 96], sizes = [8, 32], strides = [1, 1]} : vector<8x128xf32> to vector<8x32xf32>
    %59 = vector.extract_strided_slice %50 {offsets = [0, 64], sizes = [8, 32], strides = [1, 1]} : vector<8x128xf32> to vector<8x32xf32>
    %60 = math.tanh %59 : vector<8x32xf32>
    %61 = arith.mulf %57, %45 : vector<8x32xf32>
    %62 = arith.mulf %56, %60 : vector<8x32xf32>
    %63 = arith.addf %61, %62 : vector<8x32xf32>
    %64 = math.tanh %63 : vector<8x32xf32>
    %65 = arith.mulf %58, %64 : vector<8x32xf32>
    %c0_17 = arith.constant 0 : index
    %c0_18 = arith.constant 0 : index
    %c0_19 = arith.constant 0 : index
    %66 = vector.load %arg11[%c0_17, %c0_18, %c0_19] : memref<8x8x32xf32, #tpu.memory_space<vmem>>, vector<1x8x32xf32>
    %67 = vector.shape_cast %66 : vector<1x8x32xf32> to vector<8x32xf32>
    %68 = vector.shape_cast %65 : vector<8x32xf32> to vector<1x8x32xf32>
    tpu.vector_store %arg11[%c0_17, %c0_18, %c0_19], %68 {strides = array<i32>} : memref<8x8x32xf32, #tpu.memory_space<vmem>>, vector<1x8x32xf32>,
    %69 = vector.extract_strided_slice %43 {offsets = [1, 0, 0], sizes = [1, 8, 128], strides = [1, 1, 1]} : vector<8x8x128xf32> to vector<1x8x128xf32>
    %70 = vector.shape_cast %69 : vector<1x8x128xf32> to vector<8x128xf32>
    %71 = arith.truncf %65 : vector<8x32xf32> to vector<8x32xbf16>
    %cst_20 = arith.constant dense<0.000000e+00> : vector<8x128xf32>
    %72 = tpu.matmul %71, %1, %cst_20 {dimension_numbers = #tpu.dot_dimension_numbers<[1], [0], [0], [1], [0, 0, 1, 1], [], []>} : vector<8x32xbf16>, vector<32x128xbf16>, vector<8x128xf32> -> vector<8x128xf32>
    %73 = arith.addf %70, %72 : vector<8x128xf32>
    %74 = arith.negf %73 : vector<8x128xf32>
    %75 = math.exp %74 : vector<8x128xf32>
    %cst_21 = arith.constant 1.000000e+00 : f32
    %76 = vector.broadcast %cst_21 : f32 to vector<8x128xf32>
    %77 = arith.addf %76, %75 : vector<8x128xf32>
    %78 = arith.divf %76, %77 : vector<8x128xf32>
    %79 = vector.extract_strided_slice %78 {offsets = [0, 0], sizes = [8, 32], strides = [1, 1]} : vector<8x128xf32> to vector<8x32xf32>
    %80 = vector.extract_strided_slice %78 {offsets = [0, 32], sizes = [8, 32], strides = [1, 1]} : vector<8x128xf32> to vector<8x32xf32>
    %81 = vector.extract_strided_slice %78 {offsets = [0, 96], sizes = [8, 32], strides = [1, 1]} : vector<8x128xf32> to vector<8x32xf32>
    %82 = vector.extract_strided_slice %73 {offsets = [0, 64], sizes = [8, 32], strides = [1, 1]} : vector<8x128xf32> to vector<8x32xf32>
    %83 = math.tanh %82 : vector<8x32xf32>
    %84 = arith.mulf %80, %63 : vector<8x32xf32>
    %85 = arith.mulf %79, %83 : vector<8x32xf32>
    %86 = arith.addf %84, %85 : vector<8x32xf32>
    %87 = math.tanh %86 : vector<8x32xf32>
    %88 = arith.mulf %81, %87 : vector<8x32xf32>
    %c1 = arith.constant 1 : index
    %c0_22 = arith.constant 0 : index
    %c0_23 = arith.constant 0 : index
    %89 = vector.load %arg11[%c1, %c0_22, %c0_23] : memref<8x8x32xf32, #tpu.memory_space<vmem>>, vector<1x8x32xf32>
    %90 = vector.shape_cast %89 : vector<1x8x32xf32> to vector<8x32xf32>
    %91 = vector.shape_cast %88 : vector<8x32xf32> to vector<1x8x32xf32>
    tpu.vector_store %arg11[%c1, %c0_22, %c0_23], %91 {strides = array<i32>} : memref<8x8x32xf32, #tpu.memory_space<vmem>>, vector<1x8x32xf32>,
    %92 = vector.extract_strided_slice %43 {offsets = [2, 0, 0], sizes = [1, 8, 128], strides = [1, 1, 1]} : vector<8x8x128xf32> to vector<1x8x128xf32>
    %93 = vector.shape_cast %92 : vector<1x8x128xf32> to vector<8x128xf32>
    %94 = arith.truncf %88 : vector<8x32xf32> to vector<8x32xbf16>
    %cst_24 = arith.constant dense<0.000000e+00> : vector<8x128xf32>
    %95 = tpu.matmul %94, %1, %cst_24 {dimension_numbers = #tpu.dot_dimension_numbers<[1], [0], [0], [1], [0, 0, 1, 1], [], []>} : vector<8x32xbf16>, vector<32x128xbf16>, vector<8x128xf32> -> vector<8x128xf32>
    %96 = arith.addf %93, %95 : vector<8x128xf32>
    %97 = arith.negf %96 : vector<8x128xf32>
    %98 = math.exp %97 : vector<8x128xf32>
    %cst_25 = arith.constant 1.000000e+00 : f32
    %99 = vector.broadcast %cst_25 : f32 to vector<8x128xf32>
    %100 = arith.addf %99, %98 : vector<8x128xf32>
    %101 = arith.divf %99, %100 : vector<8x128xf32>
    %102 = vector.extract_strided_slice %101 {offsets = [0, 0], sizes = [8, 32], strides = [1, 1]} : vector<8x128xf32> to vector<8x32xf32>
    %103 = vector.extract_strided_slice %101 {offsets = [0, 32], sizes = [8, 32], strides = [1, 1]} : vector<8x128xf32> to vector<8x32xf32>
    %104 = vector.extract_strided_slice %101 {offsets = [0, 96], sizes = [8, 32], strides = [1, 1]} : vector<8x128xf32> to vector<8x32xf32>
    %105 = vector.extract_strided_slice %96 {offsets = [0, 64], sizes = [8, 32], strides = [1, 1]} : vector<8x128xf32> to vector<8x32xf32>
    %106 = math.tanh %105 : vector<8x32xf32>
    %107 = arith.mulf %103, %86 : vector<8x32xf32>
    %108 = arith.mulf %102, %106 : vector<8x32xf32>
    %109 = arith.addf %107, %108 : vector<8x32xf32>
    %110 = math.tanh %109 : vector<8x32xf32>
    %111 = arith.mulf %104, %110 : vector<8x32xf32>
    %c2 = arith.constant 2 : index
    %c0_26 = arith.constant 0 : index
    %c0_27 = arith.constant 0 : index
    %112 = vector.load %arg11[%c2, %c0_26, %c0_27] : memref<8x8x32xf32, #tpu.memory_space<vmem>>, vector<1x8x32xf32>
    %113 = vector.shape_cast %112 : vector<1x8x32xf32> to vector<8x32xf32>
    %114 = vector.shape_cast %111 : vector<8x32xf32> to vector<1x8x32xf32>
    tpu.vector_store %arg11[%c2, %c0_26, %c0_27], %114 {strides = array<i32>} : memref<8x8x32xf32, #tpu.memory_space<vmem>>, vector<1x8x32xf32>,
    %115 = vector.extract_strided_slice %43 {offsets = [3, 0, 0], sizes = [1, 8, 128], strides = [1, 1, 1]} : vector<8x8x128xf32> to vector<1x8x128xf32>
    %116 = vector.shape_cast %115 : vector<1x8x128xf32> to vector<8x128xf32>
    %117 = arith.truncf %111 : vector<8x32xf32> to vector<8x32xbf16>
    %cst_28 = arith.constant dense<0.000000e+00> : vector<8x128xf32>
    %118 = tpu.matmul %117, %1, %cst_28 {dimension_numbers = #tpu.dot_dimension_numbers<[1], [0], [0], [1], [0, 0, 1, 1], [], []>} : vector<8x32xbf16>, vector<32x128xbf16>, vector<8x128xf32> -> vector<8x128xf32>
    %119 = arith.addf %116, %118 : vector<8x128xf32>
    %120 = arith.negf %119 : vector<8x128xf32>
    %121 = math.exp %120 : vector<8x128xf32>
    %cst_29 = arith.constant 1.000000e+00 : f32
    %122 = vector.broadcast %cst_29 : f32 to vector<8x128xf32>
    %123 = arith.addf %122, %121 : vector<8x128xf32>
    %124 = arith.divf %122, %123 : vector<8x128xf32>
    %125 = vector.extract_strided_slice %124 {offsets = [0, 0], sizes = [8, 32], strides = [1, 1]} : vector<8x128xf32> to vector<8x32xf32>
    %126 = vector.extract_strided_slice %124 {offsets = [0, 32], sizes = [8, 32], strides = [1, 1]} : vector<8x128xf32> to vector<8x32xf32>
    %127 = vector.extract_strided_slice %124 {offsets = [0, 96], sizes = [8, 32], strides = [1, 1]} : vector<8x128xf32> to vector<8x32xf32>
    %128 = vector.extract_strided_slice %119 {offsets = [0, 64], sizes = [8, 32], strides = [1, 1]} : vector<8x128xf32> to vector<8x32xf32>
    %129 = math.tanh %128 : vector<8x32xf32>
    %130 = arith.mulf %126, %109 : vector<8x32xf32>
    %131 = arith.mulf %125, %129 : vector<8x32xf32>
    %132 = arith.addf %130, %131 : vector<8x32xf32>
    %133 = math.tanh %132 : vector<8x32xf32>
    %134 = arith.mulf %127, %133 : vector<8x32xf32>
    %c3 = arith.constant 3 : index
    %c0_30 = arith.constant 0 : index
    %c0_31 = arith.constant 0 : index
    %135 = vector.load %arg11[%c3, %c0_30, %c0_31] : memref<8x8x32xf32, #tpu.memory_space<vmem>>, vector<1x8x32xf32>
    %136 = vector.shape_cast %135 : vector<1x8x32xf32> to vector<8x32xf32>
    %137 = vector.shape_cast %134 : vector<8x32xf32> to vector<1x8x32xf32>
    tpu.vector_store %arg11[%c3, %c0_30, %c0_31], %137 {strides = array<i32>} : memref<8x8x32xf32, #tpu.memory_space<vmem>>, vector<1x8x32xf32>,
    %138 = vector.extract_strided_slice %43 {offsets = [4, 0, 0], sizes = [1, 8, 128], strides = [1, 1, 1]} : vector<8x8x128xf32> to vector<1x8x128xf32>
    %139 = vector.shape_cast %138 : vector<1x8x128xf32> to vector<8x128xf32>
    %140 = arith.truncf %134 : vector<8x32xf32> to vector<8x32xbf16>
    %cst_32 = arith.constant dense<0.000000e+00> : vector<8x128xf32>
    %141 = tpu.matmul %140, %1, %cst_32 {dimension_numbers = #tpu.dot_dimension_numbers<[1], [0], [0], [1], [0, 0, 1, 1], [], []>} : vector<8x32xbf16>, vector<32x128xbf16>, vector<8x128xf32> -> vector<8x128xf32>
    %142 = arith.addf %139, %141 : vector<8x128xf32>
    %143 = arith.negf %142 : vector<8x128xf32>
    %144 = math.exp %143 : vector<8x128xf32>
    %cst_33 = arith.constant 1.000000e+00 : f32
    %145 = vector.broadcast %cst_33 : f32 to vector<8x128xf32>
    %146 = arith.addf %145, %144 : vector<8x128xf32>
    %147 = arith.divf %145, %146 : vector<8x128xf32>
    %148 = vector.extract_strided_slice %147 {offsets = [0, 0], sizes = [8, 32], strides = [1, 1]} : vector<8x128xf32> to vector<8x32xf32>
    %149 = vector.extract_strided_slice %147 {offsets = [0, 32], sizes = [8, 32], strides = [1, 1]} : vector<8x128xf32> to vector<8x32xf32>
    %150 = vector.extract_strided_slice %147 {offsets = [0, 96], sizes = [8, 32], strides = [1, 1]} : vector<8x128xf32> to vector<8x32xf32>
    %151 = vector.extract_strided_slice %142 {offsets = [0, 64], sizes = [8, 32], strides = [1, 1]} : vector<8x128xf32> to vector<8x32xf32>
    %152 = math.tanh %151 : vector<8x32xf32>
    %153 = arith.mulf %149, %132 : vector<8x32xf32>
    %154 = arith.mulf %148, %152 : vector<8x32xf32>
    %155 = arith.addf %153, %154 : vector<8x32xf32>
    %156 = math.tanh %155 : vector<8x32xf32>
    %157 = arith.mulf %150, %156 : vector<8x32xf32>
    %c4 = arith.constant 4 : index
    %c0_34 = arith.constant 0 : index
    %c0_35 = arith.constant 0 : index
    %158 = vector.load %arg11[%c4, %c0_34, %c0_35] : memref<8x8x32xf32, #tpu.memory_space<vmem>>, vector<1x8x32xf32>
    %159 = vector.shape_cast %158 : vector<1x8x32xf32> to vector<8x32xf32>
    %160 = vector.shape_cast %157 : vector<8x32xf32> to vector<1x8x32xf32>
    tpu.vector_store %arg11[%c4, %c0_34, %c0_35], %160 {strides = array<i32>} : memref<8x8x32xf32, #tpu.memory_space<vmem>>, vector<1x8x32xf32>,
    %161 = vector.extract_strided_slice %43 {offsets = [5, 0, 0], sizes = [1, 8, 128], strides = [1, 1, 1]} : vector<8x8x128xf32> to vector<1x8x128xf32>
    %162 = vector.shape_cast %161 : vector<1x8x128xf32> to vector<8x128xf32>
    %163 = arith.truncf %157 : vector<8x32xf32> to vector<8x32xbf16>
    %cst_36 = arith.constant dense<0.000000e+00> : vector<8x128xf32>
    %164 = tpu.matmul %163, %1, %cst_36 {dimension_numbers = #tpu.dot_dimension_numbers<[1], [0], [0], [1], [0, 0, 1, 1], [], []>} : vector<8x32xbf16>, vector<32x128xbf16>, vector<8x128xf32> -> vector<8x128xf32>
    %165 = arith.addf %162, %164 : vector<8x128xf32>
    %166 = arith.negf %165 : vector<8x128xf32>
    %167 = math.exp %166 : vector<8x128xf32>
    %cst_37 = arith.constant 1.000000e+00 : f32
    %168 = vector.broadcast %cst_37 : f32 to vector<8x128xf32>
    %169 = arith.addf %168, %167 : vector<8x128xf32>
    %170 = arith.divf %168, %169 : vector<8x128xf32>
    %171 = vector.extract_strided_slice %170 {offsets = [0, 0], sizes = [8, 32], strides = [1, 1]} : vector<8x128xf32> to vector<8x32xf32>
    %172 = vector.extract_strided_slice %170 {offsets = [0, 32], sizes = [8, 32], strides = [1, 1]} : vector<8x128xf32> to vector<8x32xf32>
    %173 = vector.extract_strided_slice %170 {offsets = [0, 96], sizes = [8, 32], strides = [1, 1]} : vector<8x128xf32> to vector<8x32xf32>
    %174 = vector.extract_strided_slice %165 {offsets = [0, 64], sizes = [8, 32], strides = [1, 1]} : vector<8x128xf32> to vector<8x32xf32>
    %175 = math.tanh %174 : vector<8x32xf32>
    %176 = arith.mulf %172, %155 : vector<8x32xf32>
    %177 = arith.mulf %171, %175 : vector<8x32xf32>
    %178 = arith.addf %176, %177 : vector<8x32xf32>
    %179 = math.tanh %178 : vector<8x32xf32>
    %180 = arith.mulf %173, %179 : vector<8x32xf32>
    %c5 = arith.constant 5 : index
    %c0_38 = arith.constant 0 : index
    %c0_39 = arith.constant 0 : index
    %181 = vector.load %arg11[%c5, %c0_38, %c0_39] : memref<8x8x32xf32, #tpu.memory_space<vmem>>, vector<1x8x32xf32>
    %182 = vector.shape_cast %181 : vector<1x8x32xf32> to vector<8x32xf32>
    %183 = vector.shape_cast %180 : vector<8x32xf32> to vector<1x8x32xf32>
    tpu.vector_store %arg11[%c5, %c0_38, %c0_39], %183 {strides = array<i32>} : memref<8x8x32xf32, #tpu.memory_space<vmem>>, vector<1x8x32xf32>,
    %184 = vector.extract_strided_slice %43 {offsets = [6, 0, 0], sizes = [1, 8, 128], strides = [1, 1, 1]} : vector<8x8x128xf32> to vector<1x8x128xf32>
    %185 = vector.shape_cast %184 : vector<1x8x128xf32> to vector<8x128xf32>
    %186 = arith.truncf %180 : vector<8x32xf32> to vector<8x32xbf16>
    %cst_40 = arith.constant dense<0.000000e+00> : vector<8x128xf32>
    %187 = tpu.matmul %186, %1, %cst_40 {dimension_numbers = #tpu.dot_dimension_numbers<[1], [0], [0], [1], [0, 0, 1, 1], [], []>} : vector<8x32xbf16>, vector<32x128xbf16>, vector<8x128xf32> -> vector<8x128xf32>
    %188 = arith.addf %185, %187 : vector<8x128xf32>
    %189 = arith.negf %188 : vector<8x128xf32>
    %190 = math.exp %189 : vector<8x128xf32>
    %cst_41 = arith.constant 1.000000e+00 : f32
    %191 = vector.broadcast %cst_41 : f32 to vector<8x128xf32>
    %192 = arith.addf %191, %190 : vector<8x128xf32>
    %193 = arith.divf %191, %192 : vector<8x128xf32>
    %194 = vector.extract_strided_slice %193 {offsets = [0, 0], sizes = [8, 32], strides = [1, 1]} : vector<8x128xf32> to vector<8x32xf32>
    %195 = vector.extract_strided_slice %193 {offsets = [0, 32], sizes = [8, 32], strides = [1, 1]} : vector<8x128xf32> to vector<8x32xf32>
    %196 = vector.extract_strided_slice %193 {offsets = [0, 96], sizes = [8, 32], strides = [1, 1]} : vector<8x128xf32> to vector<8x32xf32>
    %197 = vector.extract_strided_slice %188 {offsets = [0, 64], sizes = [8, 32], strides = [1, 1]} : vector<8x128xf32> to vector<8x32xf32>
    %198 = math.tanh %197 : vector<8x32xf32>
    %199 = arith.mulf %195, %178 : vector<8x32xf32>
    %200 = arith.mulf %194, %198 : vector<8x32xf32>
    %201 = arith.addf %199, %200 : vector<8x32xf32>
    %202 = math.tanh %201 : vector<8x32xf32>
    %203 = arith.mulf %196, %202 : vector<8x32xf32>
    %c6 = arith.constant 6 : index
    %c0_42 = arith.constant 0 : index
    %c0_43 = arith.constant 0 : index
    %204 = vector.load %arg11[%c6, %c0_42, %c0_43] : memref<8x8x32xf32, #tpu.memory_space<vmem>>, vector<1x8x32xf32>
    %205 = vector.shape_cast %204 : vector<1x8x32xf32> to vector<8x32xf32>
    %206 = vector.shape_cast %203 : vector<8x32xf32> to vector<1x8x32xf32>
    tpu.vector_store %arg11[%c6, %c0_42, %c0_43], %206 {strides = array<i32>} : memref<8x8x32xf32, #tpu.memory_space<vmem>>, vector<1x8x32xf32>,
    %207 = vector.extract_strided_slice %43 {offsets = [7, 0, 0], sizes = [1, 8, 128], strides = [1, 1, 1]} : vector<8x8x128xf32> to vector<1x8x128xf32>
    %208 = vector.shape_cast %207 : vector<1x8x128xf32> to vector<8x128xf32>
    %209 = arith.truncf %203 : vector<8x32xf32> to vector<8x32xbf16>
    %cst_44 = arith.constant dense<0.000000e+00> : vector<8x128xf32>
    %210 = tpu.matmul %209, %1, %cst_44 {dimension_numbers = #tpu.dot_dimension_numbers<[1], [0], [0], [1], [0, 0, 1, 1], [], []>} : vector<8x32xbf16>, vector<32x128xbf16>, vector<8x128xf32> -> vector<8x128xf32>
    %211 = arith.addf %208, %210 : vector<8x128xf32>
    %212 = arith.negf %211 : vector<8x128xf32>
    %213 = math.exp %212 : vector<8x128xf32>
    %cst_45 = arith.constant 1.000000e+00 : f32
    %214 = vector.broadcast %cst_45 : f32 to vector<8x128xf32>
    %215 = arith.addf %214, %213 : vector<8x128xf32>
    %216 = arith.divf %214, %215 : vector<8x128xf32>
    %217 = vector.extract_strided_slice %216 {offsets = [0, 0], sizes = [8, 32], strides = [1, 1]} : vector<8x128xf32> to vector<8x32xf32>
    %218 = vector.extract_strided_slice %216 {offsets = [0, 32], sizes = [8, 32], strides = [1, 1]} : vector<8x128xf32> to vector<8x32xf32>
    %219 = vector.extract_strided_slice %216 {offsets = [0, 96], sizes = [8, 32], strides = [1, 1]} : vector<8x128xf32> to vector<8x32xf32>
    %220 = vector.extract_strided_slice %211 {offsets = [0, 64], sizes = [8, 32], strides = [1, 1]} : vector<8x128xf32> to vector<8x32xf32>
    %221 = math.tanh %220 : vector<8x32xf32>
    %222 = arith.mulf %218, %201 : vector<8x32xf32>
    %223 = arith.mulf %217, %221 : vector<8x32xf32>
    %224 = arith.addf %222, %223 : vector<8x32xf32>
    %225 = math.tanh %224 : vector<8x32xf32>
    %226 = arith.mulf %219, %225 : vector<8x32xf32>
    %c7 = arith.constant 7 : index
    %c0_46 = arith.constant 0 : index
    %c0_47 = arith.constant 0 : index
    %227 = vector.load %arg11[%c7, %c0_46, %c0_47] : memref<8x8x32xf32, #tpu.memory_space<vmem>>, vector<1x8x32xf32>
    %228 = vector.shape_cast %227 : vector<1x8x32xf32> to vector<8x32xf32>
    %229 = vector.shape_cast %226 : vector<8x32xf32> to vector<1x8x32xf32>
    tpu.vector_store %arg11[%c7, %c0_46, %c0_47], %229 {strides = array<i32>} : memref<8x8x32xf32, #tpu.memory_space<vmem>>, vector<1x8x32xf32>,
    %c0_48 = arith.constant 0 : index
    %c0_49 = arith.constant 0 : index
    %c0_50 = arith.constant 0 : index
    %230 = vector.load %arg8[%c0_48, %c0_49, %c0_50] : memref<2x8x32xf32, #tpu.memory_space<vmem>>, vector<1x8x32xf32>
    %231 = vector.shape_cast %230 : vector<1x8x32xf32> to vector<8x32xf32>
    %232 = vector.shape_cast %226 : vector<8x32xf32> to vector<1x8x32xf32>
    tpu.vector_store %arg8[%c0_48, %c0_49, %c0_50], %232 {strides = array<i32>} : memref<2x8x32xf32, #tpu.memory_space<vmem>>, vector<1x8x32xf32>,
    %c0_51 = arith.constant 0 : index
    %c0_52 = arith.constant 0 : index
    %c0_53 = arith.constant 0 : index
    %233 = vector.load %arg9[%c0_51, %c0_52, %c0_53] : memref<2x8x32xf32, #tpu.memory_space<vmem>>, vector<1x8x32xf32>
    %234 = vector.shape_cast %233 : vector<1x8x32xf32> to vector<8x32xf32>
    %235 = vector.shape_cast %224 : vector<8x32xf32> to vector<1x8x32xf32>
    tpu.vector_store %arg9[%c0_51, %c0_52, %c0_53], %235 {strides = array<i32>} : memref<2x8x32xf32, #tpu.memory_space<vmem>>, vector<1x8x32xf32>,
    %c0_54 = arith.constant 0 : index
    %c0_55 = arith.constant 0 : index
    %236 = vector.load %arg5[%c0_54, %c0_55] : memref<32x128xbf16, #tpu.memory_space<vmem>>, vector<32x128xbf16>
    %c0_56 = arith.constant 0 : index
    %c0_57 = arith.constant 0 : index
    %237 = vector.load %arg6[%c0_56, %c0_57] : memref<32x128xbf16, #tpu.memory_space<vmem>>, vector<32x128xbf16>
    %c0_58 = arith.constant 0 : index
    %c0_59 = arith.constant 0 : index
    %238 = vector.load %arg7[%c0_58, %c0_59] : memref<1x128xf32, #tpu.memory_space<vmem>>, vector<1x128xf32>
    %c0_60 = arith.constant 0 : index
    %c0_61 = arith.constant 0 : index
    %c0_62 = arith.constant 0 : index
    %239 = vector.load %arg11[%c0_60, %c0_61, %c0_62] : memref<8x8x32xf32, #tpu.memory_space<vmem>>, vector<8x8x32xf32>
    %240 = vector.shape_cast %239 : vector<8x8x32xf32> to vector<64x32xf32>
    %241 = tpu.iota {dimensions = array<i32: 0>} : vector<64x32xi32>
    %242 = tpu.iota {dimensions = array<i32: 1>} : vector<64x32xi32>
    %c1_63 = arith.constant 1 : index
    %243 = memref.load %arg0[%c1_63] : memref<2xi32, #tpu.memory_space<smem>>
    %c32_i32_64 = arith.constant 32 : i32
    %244 = vector.broadcast %c32_i32_64 : i32 to vector<64x32xi32>
    %245 = arith.muli %241, %244 : vector<64x32xi32>
    %246 = arith.addi %245, %242 : vector<64x32xi32>
    %c-1640531535_i32_65 = arith.constant -1640531535 : i32
    %247 = arith.muli %243, %c-1640531535_i32_65 : i32
    %248 = vector.broadcast %247 : i32 to vector<64x32xi32>
    %249 = arith.addi %246, %248 : vector<64x32xi32>
    %c16_i32_66 = arith.constant 16 : i32
    %250 = vector.broadcast %c16_i32_66 : i32 to vector<64x32xi32>
    %251 = arith.shrui %249, %250 : vector<64x32xi32>
    %252 = arith.xori %249, %251 : vector<64x32xi32>
    %c2146121005_i32_67 = arith.constant 2146121005 : i32
    %253 = vector.broadcast %c2146121005_i32_67 : i32 to vector<64x32xi32>
    %254 = arith.muli %252, %253 : vector<64x32xi32>
    %c15_i32_68 = arith.constant 15 : i32
    %255 = vector.broadcast %c15_i32_68 : i32 to vector<64x32xi32>
    %256 = arith.shrui %254, %255 : vector<64x32xi32>
    %257 = arith.xori %254, %256 : vector<64x32xi32>
    %c-2073254261_i32_69 = arith.constant -2073254261 : i32
    %258 = vector.broadcast %c-2073254261_i32_69 : i32 to vector<64x32xi32>
    %259 = arith.muli %257, %258 : vector<64x32xi32>
    %c16_i32_70 = arith.constant 16 : i32
    %260 = vector.broadcast %c16_i32_70 : i32 to vector<64x32xi32>
    %261 = arith.shrui %259, %260 : vector<64x32xi32>
    %262 = arith.xori %259, %261 : vector<64x32xi32>
    %c8388607_i32_71 = arith.constant 8388607 : i32
    %263 = vector.broadcast %c8388607_i32_71 : i32 to vector<64x32xi32>
    %264 = arith.andi %262, %263 : vector<64x32xi32>
    %265 = arith.sitofp %264 : vector<64x32xi32> to vector<64x32xf32>
    %cst_72 = arith.constant 1.1920929E-7 : f32
    %266 = vector.broadcast %cst_72 : f32 to vector<64x32xf32>
    %267 = arith.mulf %265, %266 : vector<64x32xf32>
    %cst_73 = arith.constant 5.000000e-01 : f32
    %268 = vector.broadcast %cst_73 : f32 to vector<64x32xf32>
    %269 = arith.cmpf oge, %267, %268 : vector<64x32xf32>
    %270 = arith.extui %269 : vector<64x32xi1> to vector<64x32xi32>
    %271 = arith.sitofp %270 : vector<64x32xi32> to vector<64x32xf32>
    %272 = arith.mulf %240, %271 : vector<64x32xf32>
    %cst_74 = arith.constant 2.000000e+00 : f32
    %273 = vector.broadcast %cst_74 : f32 to vector<64x32xf32>
    %274 = arith.mulf %272, %273 : vector<64x32xf32>
    %275 = arith.truncf %274 : vector<64x32xf32> to vector<64x32xbf16>
    %cst_75 = arith.constant dense<0.000000e+00> : vector<64x128xf32>
    %276 = tpu.matmul %275, %236, %cst_75 {dimension_numbers = #tpu.dot_dimension_numbers<[1], [0], [0], [1], [0, 0, 1, 1], [], []>} : vector<64x32xbf16>, vector<32x128xbf16>, vector<64x128xf32> -> vector<64x128xf32>
    %277 = vector.broadcast %238 : vector<1x128xf32> to vector<64x128xf32>
    %278 = arith.addf %276, %277 : vector<64x128xf32>
    %279 = vector.shape_cast %278 : vector<64x128xf32> to vector<8x8x128xf32>
    %cst_76 = arith.constant 0.000000e+00 : f32
    %280 = vector.broadcast %cst_76 : f32 to vector<8x32xf32>
    %cst_77 = arith.constant 0.000000e+00 : f32
    %281 = vector.broadcast %cst_77 : f32 to vector<8x32xf32>
    %282 = vector.extract_strided_slice %279 {offsets = [0, 0, 0], sizes = [1, 8, 128], strides = [1, 1, 1]} : vector<8x8x128xf32> to vector<1x8x128xf32>
    %283 = vector.shape_cast %282 : vector<1x8x128xf32> to vector<8x128xf32>
    %284 = arith.truncf %280 : vector<8x32xf32> to vector<8x32xbf16>
    %cst_78 = arith.constant dense<0.000000e+00> : vector<8x128xf32>
    %285 = tpu.matmul %284, %237, %cst_78 {dimension_numbers = #tpu.dot_dimension_numbers<[1], [0], [0], [1], [0, 0, 1, 1], [], []>} : vector<8x32xbf16>, vector<32x128xbf16>, vector<8x128xf32> -> vector<8x128xf32>
    %286 = arith.addf %283, %285 : vector<8x128xf32>
    %287 = arith.negf %286 : vector<8x128xf32>
    %288 = math.exp %287 : vector<8x128xf32>
    %cst_79 = arith.constant 1.000000e+00 : f32
    %289 = vector.broadcast %cst_79 : f32 to vector<8x128xf32>
    %290 = arith.addf %289, %288 : vector<8x128xf32>
    %291 = arith.divf %289, %290 : vector<8x128xf32>
    %292 = vector.extract_strided_slice %291 {offsets = [0, 0], sizes = [8, 32], strides = [1, 1]} : vector<8x128xf32> to vector<8x32xf32>
    %293 = vector.extract_strided_slice %291 {offsets = [0, 32], sizes = [8, 32], strides = [1, 1]} : vector<8x128xf32> to vector<8x32xf32>
    %294 = vector.extract_strided_slice %291 {offsets = [0, 96], sizes = [8, 32], strides = [1, 1]} : vector<8x128xf32> to vector<8x32xf32>
    %295 = vector.extract_strided_slice %286 {offsets = [0, 64], sizes = [8, 32], strides = [1, 1]} : vector<8x128xf32> to vector<8x32xf32>
    %296 = math.tanh %295 : vector<8x32xf32>
    %297 = arith.mulf %293, %281 : vector<8x32xf32>
    %298 = arith.mulf %292, %296 : vector<8x32xf32>
    %299 = arith.addf %297, %298 : vector<8x32xf32>
    %300 = math.tanh %299 : vector<8x32xf32>
    %301 = arith.mulf %294, %300 : vector<8x32xf32>
    %302 = vector.extract_strided_slice %279 {offsets = [1, 0, 0], sizes = [1, 8, 128], strides = [1, 1, 1]} : vector<8x8x128xf32> to vector<1x8x128xf32>
    %303 = vector.shape_cast %302 : vector<1x8x128xf32> to vector<8x128xf32>
    %304 = arith.truncf %301 : vector<8x32xf32> to vector<8x32xbf16>
    %cst_80 = arith.constant dense<0.000000e+00> : vector<8x128xf32>
    %305 = tpu.matmul %304, %237, %cst_80 {dimension_numbers = #tpu.dot_dimension_numbers<[1], [0], [0], [1], [0, 0, 1, 1], [], []>} : vector<8x32xbf16>, vector<32x128xbf16>, vector<8x128xf32> -> vector<8x128xf32>
    %306 = arith.addf %303, %305 : vector<8x128xf32>
    %307 = arith.negf %306 : vector<8x128xf32>
    %308 = math.exp %307 : vector<8x128xf32>
    %cst_81 = arith.constant 1.000000e+00 : f32
    %309 = vector.broadcast %cst_81 : f32 to vector<8x128xf32>
    %310 = arith.addf %309, %308 : vector<8x128xf32>
    %311 = arith.divf %309, %310 : vector<8x128xf32>
    %312 = vector.extract_strided_slice %311 {offsets = [0, 0], sizes = [8, 32], strides = [1, 1]} : vector<8x128xf32> to vector<8x32xf32>
    %313 = vector.extract_strided_slice %311 {offsets = [0, 32], sizes = [8, 32], strides = [1, 1]} : vector<8x128xf32> to vector<8x32xf32>
    %314 = vector.extract_strided_slice %311 {offsets = [0, 96], sizes = [8, 32], strides = [1, 1]} : vector<8x128xf32> to vector<8x32xf32>
    %315 = vector.extract_strided_slice %306 {offsets = [0, 64], sizes = [8, 32], strides = [1, 1]} : vector<8x128xf32> to vector<8x32xf32>
    %316 = math.tanh %315 : vector<8x32xf32>
    %317 = arith.mulf %313, %299 : vector<8x32xf32>
    %318 = arith.mulf %312, %316 : vector<8x32xf32>
    %319 = arith.addf %317, %318 : vector<8x32xf32>
    %320 = math.tanh %319 : vector<8x32xf32>
    %321 = arith.mulf %314, %320 : vector<8x32xf32>
    %322 = vector.extract_strided_slice %279 {offsets = [2, 0, 0], sizes = [1, 8, 128], strides = [1, 1, 1]} : vector<8x8x128xf32> to vector<1x8x128xf32>
    %323 = vector.shape_cast %322 : vector<1x8x128xf32> to vector<8x128xf32>
    %324 = arith.truncf %321 : vector<8x32xf32> to vector<8x32xbf16>
    %cst_82 = arith.constant dense<0.000000e+00> : vector<8x128xf32>
    %325 = tpu.matmul %324, %237, %cst_82 {dimension_numbers = #tpu.dot_dimension_numbers<[1], [0], [0], [1], [0, 0, 1, 1], [], []>} : vector<8x32xbf16>, vector<32x128xbf16>, vector<8x128xf32> -> vector<8x128xf32>
    %326 = arith.addf %323, %325 : vector<8x128xf32>
    %327 = arith.negf %326 : vector<8x128xf32>
    %328 = math.exp %327 : vector<8x128xf32>
    %cst_83 = arith.constant 1.000000e+00 : f32
    %329 = vector.broadcast %cst_83 : f32 to vector<8x128xf32>
    %330 = arith.addf %329, %328 : vector<8x128xf32>
    %331 = arith.divf %329, %330 : vector<8x128xf32>
    %332 = vector.extract_strided_slice %331 {offsets = [0, 0], sizes = [8, 32], strides = [1, 1]} : vector<8x128xf32> to vector<8x32xf32>
    %333 = vector.extract_strided_slice %331 {offsets = [0, 32], sizes = [8, 32], strides = [1, 1]} : vector<8x128xf32> to vector<8x32xf32>
    %334 = vector.extract_strided_slice %331 {offsets = [0, 96], sizes = [8, 32], strides = [1, 1]} : vector<8x128xf32> to vector<8x32xf32>
    %335 = vector.extract_strided_slice %326 {offsets = [0, 64], sizes = [8, 32], strides = [1, 1]} : vector<8x128xf32> to vector<8x32xf32>
    %336 = math.tanh %335 : vector<8x32xf32>
    %337 = arith.mulf %333, %319 : vector<8x32xf32>
    %338 = arith.mulf %332, %336 : vector<8x32xf32>
    %339 = arith.addf %337, %338 : vector<8x32xf32>
    %340 = math.tanh %339 : vector<8x32xf32>
    %341 = arith.mulf %334, %340 : vector<8x32xf32>
    %342 = vector.extract_strided_slice %279 {offsets = [3, 0, 0], sizes = [1, 8, 128], strides = [1, 1, 1]} : vector<8x8x128xf32> to vector<1x8x128xf32>
    %343 = vector.shape_cast %342 : vector<1x8x128xf32> to vector<8x128xf32>
    %344 = arith.truncf %341 : vector<8x32xf32> to vector<8x32xbf16>
    %cst_84 = arith.constant dense<0.000000e+00> : vector<8x128xf32>
    %345 = tpu.matmul %344, %237, %cst_84 {dimension_numbers = #tpu.dot_dimension_numbers<[1], [0], [0], [1], [0, 0, 1, 1], [], []>} : vector<8x32xbf16>, vector<32x128xbf16>, vector<8x128xf32> -> vector<8x128xf32>
    %346 = arith.addf %343, %345 : vector<8x128xf32>
    %347 = arith.negf %346 : vector<8x128xf32>
    %348 = math.exp %347 : vector<8x128xf32>
    %cst_85 = arith.constant 1.000000e+00 : f32
    %349 = vector.broadcast %cst_85 : f32 to vector<8x128xf32>
    %350 = arith.addf %349, %348 : vector<8x128xf32>
    %351 = arith.divf %349, %350 : vector<8x128xf32>
    %352 = vector.extract_strided_slice %351 {offsets = [0, 0], sizes = [8, 32], strides = [1, 1]} : vector<8x128xf32> to vector<8x32xf32>
    %353 = vector.extract_strided_slice %351 {offsets = [0, 32], sizes = [8, 32], strides = [1, 1]} : vector<8x128xf32> to vector<8x32xf32>
    %354 = vector.extract_strided_slice %351 {offsets = [0, 96], sizes = [8, 32], strides = [1, 1]} : vector<8x128xf32> to vector<8x32xf32>
    %355 = vector.extract_strided_slice %346 {offsets = [0, 64], sizes = [8, 32], strides = [1, 1]} : vector<8x128xf32> to vector<8x32xf32>
    %356 = math.tanh %355 : vector<8x32xf32>
    %357 = arith.mulf %353, %339 : vector<8x32xf32>
    %358 = arith.mulf %352, %356 : vector<8x32xf32>
    %359 = arith.addf %357, %358 : vector<8x32xf32>
    %360 = math.tanh %359 : vector<8x32xf32>
    %361 = arith.mulf %354, %360 : vector<8x32xf32>
    %362 = vector.extract_strided_slice %279 {offsets = [4, 0, 0], sizes = [1, 8, 128], strides = [1, 1, 1]} : vector<8x8x128xf32> to vector<1x8x128xf32>
    %363 = vector.shape_cast %362 : vector<1x8x128xf32> to vector<8x128xf32>
    %364 = arith.truncf %361 : vector<8x32xf32> to vector<8x32xbf16>
    %cst_86 = arith.constant dense<0.000000e+00> : vector<8x128xf32>
    %365 = tpu.matmul %364, %237, %cst_86 {dimension_numbers = #tpu.dot_dimension_numbers<[1], [0], [0], [1], [0, 0, 1, 1], [], []>} : vector<8x32xbf16>, vector<32x128xbf16>, vector<8x128xf32> -> vector<8x128xf32>
    %366 = arith.addf %363, %365 : vector<8x128xf32>
    %367 = arith.negf %366 : vector<8x128xf32>
    %368 = math.exp %367 : vector<8x128xf32>
    %cst_87 = arith.constant 1.000000e+00 : f32
    %369 = vector.broadcast %cst_87 : f32 to vector<8x128xf32>
    %370 = arith.addf %369, %368 : vector<8x128xf32>
    %371 = arith.divf %369, %370 : vector<8x128xf32>
    %372 = vector.extract_strided_slice %371 {offsets = [0, 0], sizes = [8, 32], strides = [1, 1]} : vector<8x128xf32> to vector<8x32xf32>
    %373 = vector.extract_strided_slice %371 {offsets = [0, 32], sizes = [8, 32], strides = [1, 1]} : vector<8x128xf32> to vector<8x32xf32>
    %374 = vector.extract_strided_slice %371 {offsets = [0, 96], sizes = [8, 32], strides = [1, 1]} : vector<8x128xf32> to vector<8x32xf32>
    %375 = vector.extract_strided_slice %366 {offsets = [0, 64], sizes = [8, 32], strides = [1, 1]} : vector<8x128xf32> to vector<8x32xf32>
    %376 = math.tanh %375 : vector<8x32xf32>
    %377 = arith.mulf %373, %359 : vector<8x32xf32>
    %378 = arith.mulf %372, %376 : vector<8x32xf32>
    %379 = arith.addf %377, %378 : vector<8x32xf32>
    %380 = math.tanh %379 : vector<8x32xf32>
    %381 = arith.mulf %374, %380 : vector<8x32xf32>
    %382 = vector.extract_strided_slice %279 {offsets = [5, 0, 0], sizes = [1, 8, 128], strides = [1, 1, 1]} : vector<8x8x128xf32> to vector<1x8x128xf32>
    %383 = vector.shape_cast %382 : vector<1x8x128xf32> to vector<8x128xf32>
    %384 = arith.truncf %381 : vector<8x32xf32> to vector<8x32xbf16>
    %cst_88 = arith.constant dense<0.000000e+00> : vector<8x128xf32>
    %385 = tpu.matmul %384, %237, %cst_88 {dimension_numbers = #tpu.dot_dimension_numbers<[1], [0], [0], [1], [0, 0, 1, 1], [], []>} : vector<8x32xbf16>, vector<32x128xbf16>, vector<8x128xf32> -> vector<8x128xf32>
    %386 = arith.addf %383, %385 : vector<8x128xf32>
    %387 = arith.negf %386 : vector<8x128xf32>
    %388 = math.exp %387 : vector<8x128xf32>
    %cst_89 = arith.constant 1.000000e+00 : f32
    %389 = vector.broadcast %cst_89 : f32 to vector<8x128xf32>
    %390 = arith.addf %389, %388 : vector<8x128xf32>
    %391 = arith.divf %389, %390 : vector<8x128xf32>
    %392 = vector.extract_strided_slice %391 {offsets = [0, 0], sizes = [8, 32], strides = [1, 1]} : vector<8x128xf32> to vector<8x32xf32>
    %393 = vector.extract_strided_slice %391 {offsets = [0, 32], sizes = [8, 32], strides = [1, 1]} : vector<8x128xf32> to vector<8x32xf32>
    %394 = vector.extract_strided_slice %391 {offsets = [0, 96], sizes = [8, 32], strides = [1, 1]} : vector<8x128xf32> to vector<8x32xf32>
    %395 = vector.extract_strided_slice %386 {offsets = [0, 64], sizes = [8, 32], strides = [1, 1]} : vector<8x128xf32> to vector<8x32xf32>
    %396 = math.tanh %395 : vector<8x32xf32>
    %397 = arith.mulf %393, %379 : vector<8x32xf32>
    %398 = arith.mulf %392, %396 : vector<8x32xf32>
    %399 = arith.addf %397, %398 : vector<8x32xf32>
    %400 = math.tanh %399 : vector<8x32xf32>
    %401 = arith.mulf %394, %400 : vector<8x32xf32>
    %402 = vector.extract_strided_slice %279 {offsets = [6, 0, 0], sizes = [1, 8, 128], strides = [1, 1, 1]} : vector<8x8x128xf32> to vector<1x8x128xf32>
    %403 = vector.shape_cast %402 : vector<1x8x128xf32> to vector<8x128xf32>
    %404 = arith.truncf %401 : vector<8x32xf32> to vector<8x32xbf16>
    %cst_90 = arith.constant dense<0.000000e+00> : vector<8x128xf32>
    %405 = tpu.matmul %404, %237, %cst_90 {dimension_numbers = #tpu.dot_dimension_numbers<[1], [0], [0], [1], [0, 0, 1, 1], [], []>} : vector<8x32xbf16>, vector<32x128xbf16>, vector<8x128xf32> -> vector<8x128xf32>
    %406 = arith.addf %403, %405 : vector<8x128xf32>
    %407 = arith.negf %406 : vector<8x128xf32>
    %408 = math.exp %407 : vector<8x128xf32>
    %cst_91 = arith.constant 1.000000e+00 : f32
    %409 = vector.broadcast %cst_91 : f32 to vector<8x128xf32>
    %410 = arith.addf %409, %408 : vector<8x128xf32>
    %411 = arith.divf %409, %410 : vector<8x128xf32>
    %412 = vector.extract_strided_slice %411 {offsets = [0, 0], sizes = [8, 32], strides = [1, 1]} : vector<8x128xf32> to vector<8x32xf32>
    %413 = vector.extract_strided_slice %411 {offsets = [0, 32], sizes = [8, 32], strides = [1, 1]} : vector<8x128xf32> to vector<8x32xf32>
    %414 = vector.extract_strided_slice %411 {offsets = [0, 96], sizes = [8, 32], strides = [1, 1]} : vector<8x128xf32> to vector<8x32xf32>
    %415 = vector.extract_strided_slice %406 {offsets = [0, 64], sizes = [8, 32], strides = [1, 1]} : vector<8x128xf32> to vector<8x32xf32>
    %416 = math.tanh %415 : vector<8x32xf32>
    %417 = arith.mulf %413, %399 : vector<8x32xf32>
    %418 = arith.mulf %412, %416 : vector<8x32xf32>
    %419 = arith.addf %417, %418 : vector<8x32xf32>
    %420 = math.tanh %419 : vector<8x32xf32>
    %421 = arith.mulf %414, %420 : vector<8x32xf32>
    %422 = vector.extract_strided_slice %279 {offsets = [7, 0, 0], sizes = [1, 8, 128], strides = [1, 1, 1]} : vector<8x8x128xf32> to vector<1x8x128xf32>
    %423 = vector.shape_cast %422 : vector<1x8x128xf32> to vector<8x128xf32>
    %424 = arith.truncf %421 : vector<8x32xf32> to vector<8x32xbf16>
    %cst_92 = arith.constant dense<0.000000e+00> : vector<8x128xf32>
    %425 = tpu.matmul %424, %237, %cst_92 {dimension_numbers = #tpu.dot_dimension_numbers<[1], [0], [0], [1], [0, 0, 1, 1], [], []>} : vector<8x32xbf16>, vector<32x128xbf16>, vector<8x128xf32> -> vector<8x128xf32>
    %426 = arith.addf %423, %425 : vector<8x128xf32>
    %427 = arith.negf %426 : vector<8x128xf32>
    %428 = math.exp %427 : vector<8x128xf32>
    %cst_93 = arith.constant 1.000000e+00 : f32
    %429 = vector.broadcast %cst_93 : f32 to vector<8x128xf32>
    %430 = arith.addf %429, %428 : vector<8x128xf32>
    %431 = arith.divf %429, %430 : vector<8x128xf32>
    %432 = vector.extract_strided_slice %431 {offsets = [0, 0], sizes = [8, 32], strides = [1, 1]} : vector<8x128xf32> to vector<8x32xf32>
    %433 = vector.extract_strided_slice %431 {offsets = [0, 32], sizes = [8, 32], strides = [1, 1]} : vector<8x128xf32> to vector<8x32xf32>
    %434 = vector.extract_strided_slice %431 {offsets = [0, 96], sizes = [8, 32], strides = [1, 1]} : vector<8x128xf32> to vector<8x32xf32>
    %435 = vector.extract_strided_slice %426 {offsets = [0, 64], sizes = [8, 32], strides = [1, 1]} : vector<8x128xf32> to vector<8x32xf32>
    %436 = math.tanh %435 : vector<8x32xf32>
    %437 = arith.mulf %433, %419 : vector<8x32xf32>
    %438 = arith.mulf %432, %436 : vector<8x32xf32>
    %439 = arith.addf %437, %438 : vector<8x32xf32>
    %440 = math.tanh %439 : vector<8x32xf32>
    %441 = arith.mulf %434, %440 : vector<8x32xf32>
    %c1_94 = arith.constant 1 : index
    %c0_95 = arith.constant 0 : index
    %c0_96 = arith.constant 0 : index
    %442 = vector.load %arg8[%c1_94, %c0_95, %c0_96] : memref<2x8x32xf32, #tpu.memory_space<vmem>>, vector<1x8x32xf32>
    %443 = vector.shape_cast %442 : vector<1x8x32xf32> to vector<8x32xf32>
    %444 = vector.shape_cast %441 : vector<8x32xf32> to vector<1x8x32xf32>
    tpu.vector_store %arg8[%c1_94, %c0_95, %c0_96], %444 {strides = array<i32>} : memref<2x8x32xf32, #tpu.memory_space<vmem>>, vector<1x8x32xf32>,
    %c1_97 = arith.constant 1 : index
    %c0_98 = arith.constant 0 : index
    %c0_99 = arith.constant 0 : index
    %445 = vector.load %arg9[%c1_97, %c0_98, %c0_99] : memref<2x8x32xf32, #tpu.memory_space<vmem>>, vector<1x8x32xf32>
    %446 = vector.shape_cast %445 : vector<1x8x32xf32> to vector<8x32xf32>
    %447 = vector.shape_cast %439 : vector<8x32xf32> to vector<1x8x32xf32>
    tpu.vector_store %arg9[%c1_97, %c0_98, %c0_99], %447 {strides = array<i32>} : memref<2x8x32xf32, #tpu.memory_space<vmem>>, vector<1x8x32xf32>,
    return
  }
}

</mosaic_0001>

<llo_original>
// kernel: tpu_custom_call.1
$region0: #{tpu_custom_call.1}
  #allocation0 [shape = 'u32[]', space=smem, size = 0x4, offset = 0x4, fixed_abs, tag = 'smem constant byte address 0x4 - core index']
  #allocation1 [shape = 'u32[144,128]{1,0:T(1,128)}', space=vmem, size = 0x12000, scoped, tag = 'internal scratch']
  #allocation2 [shape = 'f32[8,8,128]{2,1,0:T(8,128)}', space=vmem, size = 0x8000, scoped, tag = 'scratch operand']
  #allocation3 [shape = 'f32[8,8,32]{2,1,0:T(8,128)}', space=vmem, size = 0x8000, scoped, tag = 'scratch operand']
  #allocation4 [shape = 'f32[8,32]{1,0:T(8,128)}', space=vmem, size = 0x1000, scoped, tag = 'scratch operand']
  #allocation5 [shape = 'f32[8,32]{1,0:T(8,128)}', space=vmem, size = 0x1000, scoped, tag = 'scratch operand']
  %s0 = inlined_call_operand.hbm [shape: s32[2], index: 0, kind: input, shape index: {}]
  %s1 = inlined_call_operand.hbm [shape: f32[8,8,32], index: 1, kind: input, shape index: {}]
  %s2 = inlined_call_operand.hbm [shape: bf16[32,128], index: 2, kind: input, shape index: {}]
  %s3 = inlined_call_operand.hbm [shape: bf16[32,128], index: 3, kind: input, shape index: {}]
  %s4 = inlined_call_operand.vmem [shape: f32[1,128], index: 4, kind: input, shape index: {}]
  %s5 = inlined_call_operand.hbm [shape: bf16[32,128], index: 5, kind: input, shape index: {}]
  %s6 = inlined_call_operand.hbm [shape: bf16[32,128], index: 6, kind: input, shape index: {}]
  %s7 = inlined_call_operand.vmem [shape: f32[1,128], index: 7, kind: input, shape index: {}]
  %s8 = inlined_call_operand.hbm [shape: f32[2,8,32], index: 8, kind: output, shape index: {0}]
  %s9 = inlined_call_operand.hbm [shape: f32[2,8,32], index: 9, kind: output, shape index: {1}]
  %10 = xla_tuple %s8, %s9
  %s11 = sld [smem:[#allocation0]]
  $region74: #{tpu_custom_call.1} parent=0
    _
  %s13 = ssub.s32 1, %s11
  %s14 = scalar_select 0, %s13, %s11
  $region1: #{tpu_custom_call.1} parent=0
    #allocation6 [shape = 'u8[512]{0}', space=smem, size = 0x200, scoped, tag = 'input window, operand 0, single buffered']
    #allocation7 [shape = 's32[1]{0}', space=sflag, size = 0x4, scoped, tag = 'scoped memory for tpu_custom_call.1']
    #allocation8 [shape = 's32[1]{0}', space=sflag, size = 0x4, scoped, tag = 'scoped memory for tpu_custom_call.1']
    #allocation9 [shape = 's32[1]{0}', space=sflag, size = 0x4, scoped, tag = 'scoped memory for tpu_custom_call.1']
    #allocation10 [shape = 'u8[32768]{0}', space=vmem, size = 0x8000, scoped, tag = 'input window, operand 1, single buffered']
    #allocation11 [shape = 'u8[8192]{0}', space=vmem, size = 0x2000, scoped, tag = 'input window, operand 2, single buffered']
    #allocation12 [shape = 's32[1]{0}', space=sflag, size = 0x4, scoped, tag = 'scoped memory for tpu_custom_call.1']
    #allocation13 [shape = 'u8[8192]{0}', space=vmem, size = 0x2000, scoped, tag = 'input window, operand 3, single buffered']
    #allocation14 [shape = 'u8[8192]{0}', space=vmem, size = 0x2000, scoped, tag = 'input window, operand 5, single buffered']
    #allocation15 [shape = 's32[1]{0}', space=sflag, size = 0x4, scoped, tag = 'scoped memory for tpu_custom_call.1']
    #allocation16 [shape = 'u8[8192]{0}', space=vmem, size = 0x2000, scoped, tag = 'input window, operand 6, single buffered']
    #allocation17 [shape = 'u8[8192]{0}', space=vmem, size = 0x2000, scoped, tag = 'output window, operand 0, single buffered']
    #allocation18 [shape = 'u8[8192]{0}', space=vmem, size = 0x2000, scoped, tag = 'output window, operand 1, single buffered']
    #allocation19 [shape = 's32[1]{0}', space=sflag, size = 0x4, scoped, tag = 'scoped memory for tpu_custom_call.1']
    %15 = vsyncpa [#allocation9], 0
    %16 = vsyncpa [#allocation7], 0
    %17 = vsyncpa [#allocation12], 0
    %18 = vsyncpa [#allocation15], 0
    %19 = vsyncpa [#allocation8], 0
    %20 = vsyncpa [#allocation19], 0
    // Predicated region
    $region2: #{tpu_custom_call.1} parent=1 // pred_check
      _
    $region3: #{tpu_custom_call.1} parent=1 // pred_check_branch
      %22 = sbr.rel (0) target = $region5
    $region4: #{tpu_custom_call.1} parent=1 // pred_region
      %s24 = ssub.s32 16, 16
      %25 = vsyncadd [#allocation9], %s24
      %28 = dma.hbm_to_smem %s0, 16, [#allocation6], [#allocation9]
    $region5: #{tpu_custom_call.1} parent=1 // pred_fallthru
      _
    // Predicated region
    $region6: #{tpu_custom_call.1} parent=1 // pred_check
      _
    $region7: #{tpu_custom_call.1} parent=1 // pred_check_branch
      %30 = sbr.rel (0) target = $region9
    $region8: #{tpu_custom_call.1} parent=1 // pred_region
      %s32 = ssub.s32 1024, 1024
      %33 = vsyncadd [#allocation7], %s32
      %s34 = sshll.u32 [#allocation10], 4
      %s35 = int_to_ptr.vmem [resolvable:$true] %s34
      %40 = dma.hbm_to_vmem [thread:$0]  %s1, 1024, %s35, [#allocation7], 128, 128, 8
    $region9: #{tpu_custom_call.1} parent=1 // pred_fallthru
      _
    // Predicated region
    $region10: #{tpu_custom_call.1} parent=1 // pred_check
      _
    $region11: #{tpu_custom_call.1} parent=1 // pred_check_branch
      %42 = sbr.rel (0) target = $region13
    $region12: #{tpu_custom_call.1} parent=1 // pred_region
      %s44 = ssub.s32 256, 256
      %45 = vsyncadd [#allocation12], %s44
      %s46 = sshll.u32 [#allocation11], 4
      %s47 = int_to_ptr.vmem [resolvable:$true] %s46
      %52 = dma.hbm_to_vmem [thread:$0]  %s2, 256, %s47, [#allocation12], 64, 64, 4
    $region13: #{tpu_custom_call.1} parent=1 // pred_fallthru
      _
    // Predicated region
    $region14: #{tpu_custom_call.1} parent=1 // pred_check
      _
    $region15: #{tpu_custom_call.1} parent=1 // pred_check_branch
      %54 = sbr.rel (0) target = $region17
    $region16: #{tpu_custom_call.1} parent=1 // pred_region
      %s56 = ssub.s32 256, 256
      %57 = vsyncadd [#allocation12], %s56
      %s58 = sshll.u32 [#allocation13], 4
      %s59 = int_to_ptr.vmem [resolvable:$true] %s58
      %64 = dma.hbm_to_vmem [thread:$0]  %s3, 256, %s59, [#allocation12], 64, 64, 4
    $region17: #{tpu_custom_call.1} parent=1 // pred_fallthru
      _
    // Predicated region
    $region18: #{tpu_custom_call.1} parent=1 // pred_check
      _
    $region19: #{tpu_custom_call.1} parent=1 // pred_check_branch
      %66 = sbr.rel (0) target = $region21
    $region20: #{tpu_custom_call.1} parent=1 // pred_region
      _
    $region21: #{tpu_custom_call.1} parent=1 // pred_fallthru
      _
    // Predicated region
    $region22: #{tpu_custom_call.1} parent=1 // pred_check
      _
    $region23: #{tpu_custom_call.1} parent=1 // pred_check_branch
      %68 = sbr.rel (0) target = $region25
    $region24: #{tpu_custom_call.1} parent=1 // pred_region
      %s70 = ssub.s32 256, 256
      %71 = vsyncadd [#allocation15], %s70
      %s72 = sshll.u32 [#allocation14], 4
      %s73 = int_to_ptr.vmem [resolvable:$true] %s72
      %78 = dma.hbm_to_vmem [thread:$0]  %s5, 256, %s73, [#allocation15], 64, 64, 4
    $region25: #{tpu_custom_call.1} parent=1 // pred_fallthru
      _
    // Predicated region
    $region26: #{tpu_custom_call.1} parent=1 // pred_check
      _
    $region27: #{tpu_custom_call.1} parent=1 // pred_check_branch
      %80 = sbr.rel (0) target = $region29
    $region28: #{tpu_custom_call.1} parent=1 // pred_region
      %s82 = ssub.s32 256, 256
      %83 = vsyncadd [#allocation15], %s82
      %s84 = sshll.u32 [#allocation16], 4
      %s85 = int_to_ptr.vmem [resolvable:$true] %s84
      %90 = dma.hbm_to_vmem [thread:$0]  %s6, 256, %s85, [#allocation15], 64, 64, 4
    $region29: #{tpu_custom_call.1} parent=1 // pred_fallthru
      _
    // Predicated region
    $region30: #{tpu_custom_call.1} parent=1 // pred_check
      _
    $region31: #{tpu_custom_call.1} parent=1 // pred_check_branch
      %92 = sbr.rel (0) target = $region33
    $region32: #{tpu_custom_call.1} parent=1 // pred_region
      _
    $region33: #{tpu_custom_call.1} parent=1 // pred_fallthru
      _
    // Predicated region
    $region34: #{tpu_custom_call.1} parent=1 // pred_check
      _
    $region35: #{tpu_custom_call.1} parent=1 // pred_check_branch
      %94 = sbr.rel (0) target = $region37
    $region36: #{tpu_custom_call.1} parent=1 // pred_region
      %95 = dma.done [#allocation9], 16
    $region37: #{tpu_custom_call.1} parent=1 // pred_fallthru
      _
    // Predicated region
    $region38: #{tpu_custom_call.1} parent=1 // pred_check
      _
    $region39: #{tpu_custom_call.1} parent=1 // pred_check_branch
      %97 = sbr.rel (0) target = $region41
    $region40: #{tpu_custom_call.1} parent=1 // pred_region
      %98 = dma.done [#allocation7], 1024
    $region41: #{tpu_custom_call.1} parent=1 // pred_fallthru
      _
    // Predicated region
    $region42: #{tpu_custom_call.1} parent=1 // pred_check
      _
    $region43: #{tpu_custom_call.1} parent=1 // pred_check_branch
      %100 = sbr.rel (0) target = $region45
    $region44: #{tpu_custom_call.1} parent=1 // pred_region
      %101 = dma.done [#allocation12], 256
    $region45: #{tpu_custom_call.1} parent=1 // pred_fallthru
      _
    // Predicated region
    $region46: #{tpu_custom_call.1} parent=1 // pred_check
      _
    $region47: #{tpu_custom_call.1} parent=1 // pred_check_branch
      %103 = sbr.rel (0) target = $region49
    $region48: #{tpu_custom_call.1} parent=1 // pred_region
      %104 = dma.done [#allocation12], 256
    $region49: #{tpu_custom_call.1} parent=1 // pred_fallthru
      _
    // Predicated region
    $region50: #{tpu_custom_call.1} parent=1 // pred_check
      _
    $region51: #{tpu_custom_call.1} parent=1 // pred_check_branch
      %106 = sbr.rel (0) target = $region53
    $region52: #{tpu_custom_call.1} parent=1 // pred_region
      %107 = dma.done [#allocation15], 256
    $region53: #{tpu_custom_call.1} parent=1 // pred_fallthru
      _
    // Predicated region
    $region54: #{tpu_custom_call.1} parent=1 // pred_check
      _
    $region55: #{tpu_custom_call.1} parent=1 // pred_check_branch
      %109 = sbr.rel (0) target = $region57
    $region56: #{tpu_custom_call.1} parent=1 // pred_region
      %110 = dma.done [#allocation15], 256
    $region57: #{tpu_custom_call.1} parent=1 // pred_fallthru
      _
    %111 = sfence
    %v113 = vld [vmem:[#allocation11] sm:$0xf]
    %v114 = vld [vmem:[#allocation11 + $0x4] sm:$0xf]
    %v115 = vld [vmem:[#allocation11 + $0x8] sm:$0xf]
    %v116 = vld [vmem:[#allocation11 + $0xc] sm:$0xf]
    %v117 = vld [vmem:[#allocation13] sm:$0xf]
    %v118 = vld [vmem:[#allocation13 + $0x4] sm:$0xf]
    %v119 = vld [vmem:[#allocation13 + $0x8] sm:$0xf]
    %v120 = vld [vmem:[#allocation13 + $0xc] sm:$0xf]
    %v121 = vld [vmem:[%s4] sm:$0x1]
    %v122 = vld [vmem:[#allocation10] sm:$0xff]
    %v123 = vld [vmem:[#allocation10 + $0x8] sm:$0xff]
    %v124 = vld [vmem:[#allocation10 + $0x10] sm:$0xff]
    %v125 = vld [vmem:[#allocation10 + $0x18] sm:$0xff]
    %v126 = vld [vmem:[#allocation10 + $0x20] sm:$0xff]
    %v127 = vld [vmem:[#allocation10 + $0x28] sm:$0xff]
    %v128 = vld [vmem:[#allocation10 + $0x30] sm:$0xff]
    %v129 = vld [vmem:[#allocation10 + $0x38] sm:$0xff]
    %v130 = vlaneseq
    %v131 = vshrl.u32 %v130, 7
    %v132 = vadd.s32 %v131, 8
    %v133 = vadd.s32 %v131, 16
    %v134 = vadd.s32 %v131, 24
    %v135 = vadd.s32 %v131, 32
    %v136 = vadd.s32 %v131, 40
    %v137 = vadd.s32 %v131, 48
    %v138 = vadd.s32 %v131, 56
    %v139 = vlaneseq
    %v140 = vand.u32 %v139, 127
    %s141 = sld [smem:[#allocation6]]
    %v142 = vmul.u32 %v131, 32
    %v143 = vmul.u32 %v132, 32
    %v144 = vmul.u32 %v133, 32
    %v145 = vmul.u32 %v134, 32
    %v146 = vmul.u32 %v135, 32
    %v147 = vmul.u32 %v136, 32
    %v148 = vmul.u32 %v137, 32
    %v149 = vmul.u32 %v138, 32
    %v150 = vadd.s32 %v142, %v140
    %v151 = vadd.s32 %v143, %v140
    %v152 = vadd.s32 %v144, %v140
    %v153 = vadd.s32 %v145, %v140
    %v154 = vadd.s32 %v146, %v140
    %v155 = vadd.s32 %v147, %v140
    %v156 = vadd.s32 %v148, %v140
    %v157 = vadd.s32 %v149, %v140
    %s158 = smul.u32 %s141, 2654435761
    %v159 = vstv %s158
    %v160 = vadd.s32 %v150, %v159
    %v161 = vadd.s32 %v151, %v159
    %v162 = vadd.s32 %v152, %v159
    %v163 = vadd.s32 %v153, %v159
    %v164 = vadd.s32 %v154, %v159
    %v165 = vadd.s32 %v155, %v159
    %v166 = vadd.s32 %v156, %v159
    %v167 = vadd.s32 %v157, %v159
    %v168 = vshrl.u32 %v160, 16
    %v169 = vshrl.u32 %v161, 16
    %v170 = vshrl.u32 %v162, 16
    %v171 = vshrl.u32 %v163, 16
    %v172 = vshrl.u32 %v164, 16
    %v173 = vshrl.u32 %v165, 16
    %v174 = vshrl.u32 %v166, 16
    %v175 = vshrl.u32 %v167, 16
    %v176 = vxor.u32 %v160, %v168
    %v177 = vxor.u32 %v161, %v169
    %v178 = vxor.u32 %v162, %v170
    %v179 = vxor.u32 %v163, %v171
    %v180 = vxor.u32 %v164, %v172
    %v181 = vxor.u32 %v165, %v173
    %v182 = vxor.u32 %v166, %v174
    %v183 = vxor.u32 %v167, %v175
    %v184 = vmul.u32 %v176, 2146121005
    %v185 = vmul.u32 %v177, 2146121005
    %v186 = vmul.u32 %v178, 2146121005
    %v187 = vmul.u32 %v179, 2146121005
    %v188 = vmul.u32 %v180, 2146121005
    %v189 = vmul.u32 %v181, 2146121005
    %v190 = vmul.u32 %v182, 2146121005
    %v191 = vmul.u32 %v183, 2146121005
    %v192 = vshrl.u32 %v184, 15
    %v193 = vshrl.u32 %v185, 15
    %v194 = vshrl.u32 %v186, 15
    %v195 = vshrl.u32 %v187, 15
    %v196 = vshrl.u32 %v188, 15
    %v197 = vshrl.u32 %v189, 15
    %v198 = vshrl.u32 %v190, 15
    %v199 = vshrl.u32 %v191, 15
    %v200 = vxor.u32 %v184, %v192
    %v201 = vxor.u32 %v185, %v193
    %v202 = vxor.u32 %v186, %v194
    %v203 = vxor.u32 %v187, %v195
    %v204 = vxor.u32 %v188, %v196
    %v205 = vxor.u32 %v189, %v197
    %v206 = vxor.u32 %v190, %v198
    %v207 = vxor.u32 %v191, %v199
    %v208 = vmul.u32 %v200, 2221713035
    %v209 = vmul.u32 %v201, 2221713035
    %v210 = vmul.u32 %v202, 2221713035
    %v211 = vmul.u32 %v203, 2221713035
    %v212 = vmul.u32 %v204, 2221713035
    %v213 = vmul.u32 %v205, 2221713035
    %v214 = vmul.u32 %v206, 2221713035
    %v215 = vmul.u32 %v207, 2221713035
    %v216 = vshrl.u32 %v208, 16
    %v217 = vshrl.u32 %v209, 16
    %v218 = vshrl.u32 %v210, 16
    %v219 = vshrl.u32 %v211, 16
    %v220 = vshrl.u32 %v212, 16
    %v221 = vshrl.u32 %v213, 16
    %v222 = vshrl.u32 %v214, 16
    %v223 = vshrl.u32 %v215, 16
    %v224 = vxor.u32 %v208, %v216
    %v225 = vxor.u32 %v209, %v217
    %v226 = vxor.u32 %v210, %v218
    %v227 = vxor.u32 %v211, %v219
    %v228 = vxor.u32 %v212, %v220
    %v229 = vxor.u32 %v213, %v221
    %v230 = vxor.u32 %v214, %v222
    %v231 = vxor.u32 %v215, %v223
    %v232 = vand.u32 %v224, 8388607
    %v233 = vand.u32 %v225, 8388607
    %v234 = vand.u32 %v226, 8388607
    %v235 = vand.u32 %v227, 8388607
    %v236 = vand.u32 %v228, 8388607
    %v237 = vand.u32 %v229, 8388607
    %v238 = vand.u32 %v230, 8388607
    %v239 = vand.u32 %v231, 8388607
    %v240 = vcvt.s32.f32 %v232
    %v241 = vcvt.s32.f32 %v233
    %v242 = vcvt.s32.f32 %v234
    %v243 = vcvt.s32.f32 %v235
    %v244 = vcvt.s32.f32 %v236
    %v245 = vcvt.s32.f32 %v237
    %v246 = vcvt.s32.f32 %v238
    %v247 = vcvt.s32.f32 %v239
    %v248 = vmul.f32 %v240, 1.1920929e-07
    %v249 = vmul.f32 %v241, 1.1920929e-07
    %v250 = vmul.f32 %v242, 1.1920929e-07
    %v251 = vmul.f32 %v243, 1.1920929e-07
    %v252 = vmul.f32 %v244, 1.1920929e-07
    %v253 = vmul.f32 %v245, 1.1920929e-07
    %v254 = vmul.f32 %v246, 1.1920929e-07
    %v255 = vmul.f32 %v247, 1.1920929e-07
    %vm256 = vcmp.ge.f32.partialorder %v248, 0.5
    %vm257 = vcmp.ge.f32.partialorder %v249, 0.5
    %vm258 = vcmp.ge.f32.partialorder %v250, 0.5
    %vm259 = vcmp.ge.f32.partialorder %v251, 0.5
    %vm260 = vcmp.ge.f32.partialorder %v252, 0.5
    %vm261 = vcmp.ge.f32.partialorder %v253, 0.5
    %vm262 = vcmp.ge.f32.partialorder %v254, 0.5
    %vm263 = vcmp.ge.f32.partialorder %v255, 0.5
    %v264 = vsel %vm256, 1, 0
    %v265 = vsel %vm257, 1, 0
    %v266 = vsel %vm258, 1, 0
    %v267 = vsel %vm259, 1, 0
    %v268 = vsel %vm260, 1, 0
    %v269 = vsel %vm261, 1, 0
    %v270 = vsel %vm262, 1, 0
    %v271 = vsel %vm263, 1, 0
    %v272 = vcvt.s32.f32 %v264
    %v273 = vcvt.s32.f32 %v265
    %v274 = vcvt.s32.f32 %v266
    %v275 = vcvt.s32.f32 %v267
    %v276 = vcvt.s32.f32 %v268
    %v277 = vcvt.s32.f32 %v269
    %v278 = vcvt.s32.f32 %v270
    %v279 = vcvt.s32.f32 %v271
    %v280 = vmul.f32 %v122, %v272
    %v281 = vmul.f32 %v123, %v273
    %v282 = vmul.f32 %v124, %v274
    %v283 = vmul.f32 %v125, %v275
    %v284 = vmul.f32 %v126, %v276
    %v285 = vmul.f32 %v127, %v277
    %v286 = vmul.f32 %v128, %v278
    %v287 = vmul.f32 %v129, %v279
    %v288 = vmul.f32 %v280, 2.0
    %v289 = vmul.f32 %v281, 2.0
    %v290 = vmul.f32 %v282, 2.0
    %v291 = vmul.f32 %v283, 2.0
    %v292 = vmul.f32 %v284, 2.0
    %v293 = vmul.f32 %v285, 2.0
    %v294 = vmul.f32 %v286, 2.0
    %v295 = vmul.f32 %v287, 2.0
    %v296 = vpack.c.bf16 %v289, %v288
    %v297 = vpack.c.bf16 %v291, %v290
    %v298 = vpack.c.bf16 %v293, %v292
    %v299 = vpack.c.bf16 %v295, %v294
    %v301 = vlaneseq
    %v302 = vshrl.u32 %v301, 7
    %v303 = vsub.s32 0, %v302
    %v304 = vrot.slane %v121, %v303
    %v310 = vunpack.c.l.b16 %v113
    %v311 = vunpack.c.l.b16 %v114
    %v312 = vunpack.c.l.b16 %v115
    %v313 = vunpack.c.l.b16 %v116
    %v314 = vpack.c.b16 %v311, %v310
    %v315 = vpack.c.b16 %v313, %v312
    %vm318 = vcmask 261120
    %v320 = vsel %vm318, %v296, 0
    %v323 = vsel %vm318, %v297, 0
    %v326 = vsel %vm318, %v298, 0
    %v329 = vsel %vm318, %v299, 0
    %331 = vmatprep.subr.bf16.mxu0 0
    %332 = vmatpush1.bf16.msra.mxu0 0
    %333 = vmatprep.subr.bf16.mxu0 0
    %334 = vmatpush1.bf16.msra.mxu0 0
    %335 = vmatprep.subr.bf16.mxu0 0
    %336 = vmatpush1.bf16.msra.mxu0 0
    %337 = vmatprep.subr.bf16.mxu0 0
    %338 = vmatpush1.bf16.msra.mxu0 0
    %339 = vmatprep.subr.bf16.mxu0 0
    %340 = vmatpush1.bf16.msra.mxu0 0
    %341 = vmatprep.subr.bf16.mxu0 0
    %342 = vmatpush1.bf16.msra.mxu0 0
    %343 = vmatprep.subr.bf16.mxu0 0
    %344 = vmatpush1.bf16.msra.mxu0 %v315
    %345 = vmatprep.subr.bf16.mxu0 0
    %346 = vmatpush1.bf16.msra.mxu0 %v314
    %347 = vmatprep.subr.bf16.mxu0 0
    %348 = vmatpush2.bf16.msra.mxu0 0
    %349 = vmatprep.subr.bf16.mxu0 0
    %350 = vmatpush2.bf16.msra.mxu0 0
    %351 = vmatprep.subr.bf16.mxu0 0
    %352 = vmatpush2.bf16.msra.mxu0 0
    %353 = vmatprep.subr.bf16.mxu0 0
    %354 = vmatpush2.bf16.msra.mxu0 0
    %355 = vmatprep.subr.bf16.mxu0 0
    %356 = vmatpush2.bf16.msra.mxu0 0
    %357 = vmatprep.subr.bf16.mxu0 0
    %358 = vmatpush2.bf16.msra.mxu0 0
    %359 = vmatprep.subr.bf16.mxu0 0
    %360 = vmatpush2.bf16.msra.mxu0 0
    %361 = vmatprep.subr.bf16.mxu0 0
    %362 = vmatpush2.bf16.msra.mxu0 0
    %363 = vmatprep.mubr.bf16.mxu0 0
    %364 = vmatmul.mubr.bf16.gmra.mxu0 %v320
    %v365 = vpop.f32.mrf.mxu0
    %v366 = vadd.f32 %v304, %v365
    %v367 = vpop.f32.mrf.mxu0
    %v368 = vpop.f32.mrf.mxu0
    %v369 = vadd.f32 %v304, %v368
    %v370 = vpop.f32.mrf.mxu0
    %371 = vmatprep.mubr.bf16.mxu0 0
    %372 = vmatmul.mubr.bf16.gmra.mxu0 %v323
    %v373 = vpop.f32.mrf.mxu0
    %v374 = vadd.f32 %v304, %v373
    %v375 = vpop.f32.mrf.mxu0
    %v376 = vpop.f32.mrf.mxu0
    %v377 = vadd.f32 %v304, %v376
    %v378 = vpop.f32.mrf.mxu0
    %379 = vmatprep.mubr.bf16.mxu0 0
    %380 = vmatmul.mubr.bf16.gmra.mxu0 %v326
    %v381 = vpop.f32.mrf.mxu0
    %v382 = vadd.f32 %v304, %v381
    %v383 = vpop.f32.mrf.mxu0
    %v384 = vpop.f32.mrf.mxu0
    %v385 = vadd.f32 %v304, %v384
    %v386 = vpop.f32.mrf.mxu0
    %387 = vmatprep.mubr.bf16.mxu0 0
    %388 = vmatmul.mubr.bf16.gmra.mxu0 %v329
    %v389 = vpop.f32.mrf.mxu0
    %v390 = vadd.f32 %v304, %v389
    %v391 = vpop.f32.mrf.mxu0
    %v392 = vpop.f32.mrf.mxu0
    %v393 = vadd.f32 %v304, %v392
    %v394 = vpop.f32.mrf.mxu0
    %395 = vdwg.mxu0
    %v400 = vunpack.c.l.b16 %v117
    %v401 = vunpack.c.l.b16 %v118
    %v402 = vunpack.c.l.b16 %v119
    %v403 = vunpack.c.l.b16 %v120
    %v404 = vpack.c.b16 %v401, %v400
    %v405 = vpack.c.b16 %v403, %v402
    %v409 = vsel %vm318, 0, 0
    %411 = vmatprep.subr.bf16.mxu0 0
    %412 = vmatpush1.bf16.msra.mxu0 0
    %413 = vmatprep.subr.bf16.mxu0 0
    %414 = vmatpush1.bf16.msra.mxu0 0
    %415 = vmatprep.subr.bf16.mxu0 0
    %416 = vmatpush1.bf16.msra.mxu0 0
    %417 = vmatprep.subr.bf16.mxu0 0
    %418 = vmatpush1.bf16.msra.mxu0 0
    %419 = vmatprep.subr.bf16.mxu0 0
    %420 = vmatpush1.bf16.msra.mxu0 0
    %421 = vmatprep.subr.bf16.mxu0 0
    %422 = vmatpush1.bf16.msra.mxu0 0
    %423 = vmatprep.subr.bf16.mxu0 0
    %424 = vmatpush1.bf16.msra.mxu0 %v405
    %425 = vmatprep.subr.bf16.mxu0 0
    %426 = vmatpush1.bf16.msra.mxu0 %v404
    %427 = vmatprep.subr.bf16.mxu0 0
    %428 = vmatpush2.bf16.msra.mxu0 0
    %429 = vmatprep.subr.bf16.mxu0 0
    %430 = vmatpush2.bf16.msra.mxu0 0
    %431 = vmatprep.subr.bf16.mxu0 0
    %432 = vmatpush2.bf16.msra.mxu0 0
    %433 = vmatprep.subr.bf16.mxu0 0
    %434 = vmatpush2.bf16.msra.mxu0 0
    %435 = vmatprep.subr.bf16.mxu0 0
    %436 = vmatpush2.bf16.msra.mxu0 0
    %437 = vmatprep.subr.bf16.mxu0 0
    %438 = vmatpush2.bf16.msra.mxu0 0
    %439 = vmatprep.subr.bf16.mxu0 0
    %440 = vmatpush2.bf16.msra.mxu0 0
    %441 = vmatprep.subr.bf16.mxu0 0
    %442 = vmatpush2.bf16.msra.mxu0 0
    %443 = vmatprep.mubr.bf16.mxu0 0
    %444 = vmatmul.mubr.bf16.gmra.mxu0 %v409
    %v445 = vpop.f32.mrf.mxu0
    %v446 = vadd.f32 0.0, %v445
    %v447 = vpop.f32.mrf.mxu0
    %v448 = vpop.f32.mrf.mxu0
    %v449 = vpop.f32.mrf.mxu0
    %450 = vdwg.mxu0
    %v451 = vadd.f32 %v366, %v446
    %v452 = vxor.u32 %v451, 2147483648
    %v453 = vmul.f32 %v452, 1.442695
    %v454 = vpow.pop %v453
    %v455 = vadd.f32 %v454, 1.0
    %v456 = vrcp.pop %v455
    %v457 = vmul.f32 1.0, %v456
    %v458 = vtanh.pop %v451
    %v459 = vmul.f32 %v457, 0.0
    %461 = vrot.lane.b32.xlu0 %v458, 64
    %v462 = vpop.permute.xlu0 %461
    %v464 = vmul.f32 %v457, %v462
    %466 = vrot.lane.b32.xlu0 %v464, 32
    %v467 = vpop.permute.xlu0 %466
    %v469 = vadd.f32 %v459, %v467
    %v470 = vtanh.pop %v469
    %472 = vrot.lane.b32.xlu0 %v470, 64
    %v473 = vpop.permute.xlu0 %472
    %v475 = vmul.f32 %v457, %v473
    %477 = vrot.lane.b32.xlu0 %v475, 32
    %v478 = vpop.permute.xlu0 %477
    %480 = vst.msk [vmem:[#allocation3] sm:$0xff] %vm318, %v478
    %v481 = vpack.c.bf16 %v475, %v475
    %483 = vrot.lane.b32.xlu0 %v481, 32
    %v484 = vpop.permute.xlu0 %483
    %v486 = vsel %vm318, %v484, 0
    %488 = vmatprep.subr.bf16.mxu0 0
    %489 = vmatpush1.bf16.msra.mxu0 0
    %490 = vmatprep.subr.bf16.mxu0 0
    %491 = vmatpush1.bf16.msra.mxu0 0
    %492 = vmatprep.subr.bf16.mxu0 0
    %493 = vmatpush1.bf16.msra.mxu0 0
    %494 = vmatprep.subr.bf16.mxu0 0
    %495 = vmatpush1.bf16.msra.mxu0 0
    %496 = vmatprep.subr.bf16.mxu0 0
    %497 = vmatpush1.bf16.msra.mxu0 0
    %498 = vmatprep.subr.bf16.mxu0 0
    %499 = vmatpush1.bf16.msra.mxu0 0
    %500 = vmatprep.subr.bf16.mxu0 0
    %501 = vmatpush1.bf16.msra.mxu0 %v405
    %502 = vmatprep.subr.bf16.mxu0 0
    %503 = vmatpush1.bf16.msra.mxu0 %v404
    %504 = vmatprep.subr.bf16.mxu0 0
    %505 = vmatpush2.bf16.msra.mxu0 0
    %506 = vmatprep.subr.bf16.mxu0 0
    %507 = vmatpush2.bf16.msra.mxu0 0
    %508 = vmatprep.subr.bf16.mxu0 0
    %509 = vmatpush2.bf16.msra.mxu0 0
    %510 = vmatprep.subr.bf16.mxu0 0
    %511 = vmatpush2.bf16.msra.mxu0 0
    %512 = vmatprep.subr.bf16.mxu0 0
    %513 = vmatpush2.bf16.msra.mxu0 0
    %514 = vmatprep.subr.bf16.mxu0 0
    %515 = vmatpush2.bf16.msra.mxu0 0
    %516 = vmatprep.subr.bf16.mxu0 0
    %517 = vmatpush2.bf16.msra.mxu0 0
    %518 = vmatprep.subr.bf16.mxu0 0
    %519 = vmatpush2.bf16.msra.mxu0 0
    %520 = vmatprep.mubr.bf16.mxu0 0
    %521 = vmatmul.mubr.bf16.gmra.mxu0 %v486
    %v522 = vpop.f32.mrf.mxu0
    %v523 = vadd.f32 0.0, %v522
    %v524 = vpop.f32.mrf.mxu0
    %v525 = vpop.f32.mrf.mxu0
    %v526 = vpop.f32.mrf.mxu0
    %527 = vdwg.mxu0
    %v528 = vadd.f32 %v369, %v523
    %v529 = vxor.u32 %v528, 2147483648
    %v530 = vmul.f32 %v529, 1.442695
    %v531 = vpow.pop %v530
    %v532 = vadd.f32 %v531, 1.0
    %v533 = vrcp.pop %v532
    %v534 = vmul.f32 1.0, %v533
    %v535 = vtanh.pop %v528
    %v536 = vmul.f32 %v534, %v469
    %538 = vrot.lane.b32.xlu0 %v535, 64
    %v539 = vpop.permute.xlu0 %538
    %v541 = vmul.f32 %v534, %v539
    %543 = vrot.lane.b32.xlu0 %v541, 32
    %v544 = vpop.permute.xlu0 %543
    %v546 = vadd.f32 %v536, %v544
    %v547 = vtanh.pop %v546
    %549 = vrot.lane.b32.xlu0 %v547, 64
    %v550 = vpop.permute.xlu0 %549
    %v552 = vmul.f32 %v534, %v550
    %554 = vrot.lane.b32.xlu0 %v552, 32
    %v555 = vpop.permute.xlu0 %554
    %s557 = scalar_lea.vmem [#allocation3], 8
    %558 = vst.msk [vmem:[%s557] sm:$0xff] %vm318, %v555
    %v559 = vpack.c.bf16 %v552, %v552
    %561 = vrot.lane.b32.xlu0 %v559, 32
    %v562 = vpop.permute.xlu0 %561
    %v564 = vsel %vm318, %v562, 0
    %566 = vmatprep.subr.bf16.mxu0 0
    %567 = vmatpush1.bf16.msra.mxu0 0
    %568 = vmatprep.subr.bf16.mxu0 0
    %569 = vmatpush1.bf16.msra.mxu0 0
    %570 = vmatprep.subr.bf16.mxu0 0
    %571 = vmatpush1.bf16.msra.mxu0 0
    %572 = vmatprep.subr.bf16.mxu0 0
    %573 = vmatpush1.bf16.msra.mxu0 0
    %574 = vmatprep.subr.bf16.mxu0 0
    %575 = vmatpush1.bf16.msra.mxu0 0
    %576 = vmatprep.subr.bf16.mxu0 0
    %577 = vmatpush1.bf16.msra.mxu0 0
    %578 = vmatprep.subr.bf16.mxu0 0
    %579 = vmatpush1.bf16.msra.mxu0 %v405
    %580 = vmatprep.subr.bf16.mxu0 0
    %581 = vmatpush1.bf16.msra.mxu0 %v404
    %582 = vmatprep.subr.bf16.mxu0 0
    %583 = vmatpush2.bf16.msra.mxu0 0
    %584 = vmatprep.subr.bf16.mxu0 0
    %585 = vmatpush2.bf16.msra.mxu0 0
    %586 = vmatprep.subr.bf16.mxu0 0
    %587 = vmatpush2.bf16.msra.mxu0 0
    %588 = vmatprep.subr.bf16.mxu0 0
    %589 = vmatpush2.bf16.msra.mxu0 0
    %590 = vmatprep.subr.bf16.mxu0 0
    %591 = vmatpush2.bf16.msra.mxu0 0
    %592 = vmatprep.subr.bf16.mxu0 0
    %593 = vmatpush2.bf16.msra.mxu0 0
    %594 = vmatprep.subr.bf16.mxu0 0
    %595 = vmatpush2.bf16.msra.mxu0 0
    %596 = vmatprep.subr.bf16.mxu0 0
    %597 = vmatpush2.bf16.msra.mxu0 0
    %598 = vmatprep.mubr.bf16.mxu0 0
    %599 = vmatmul.mubr.bf16.gmra.mxu0 %v564
    %v600 = vpop.f32.mrf.mxu0
    %v601 = vadd.f32 0.0, %v600
    %v602 = vpop.f32.mrf.mxu0
    %v603 = vpop.f32.mrf.mxu0
    %v604 = vpop.f32.mrf.mxu0
    %605 = vdwg.mxu0
    %v606 = vadd.f32 %v374, %v601
    %v607 = vxor.u32 %v606, 2147483648
    %v608 = vmul.f32 %v607, 1.442695
    %v609 = vpow.pop %v608
    %v610 = vadd.f32 %v609, 1.0
    %v611 = vrcp.pop %v610
    %v612 = vmul.f32 1.0, %v611
    %v613 = vtanh.pop %v606
    %v614 = vmul.f32 %v612, %v546
    %616 = vrot.lane.b32.xlu0 %v613, 64
    %v617 = vpop.permute.xlu0 %616
    %v619 = vmul.f32 %v612, %v617
    %621 = vrot.lane.b32.xlu0 %v619, 32
    %v622 = vpop.permute.xlu0 %621
    %v624 = vadd.f32 %v614, %v622
    %v625 = vtanh.pop %v624
    %627 = vrot.lane.b32.xlu0 %v625, 64
    %v628 = vpop.permute.xlu0 %627
    %v630 = vmul.f32 %v612, %v628
    %632 = vrot.lane.b32.xlu0 %v630, 32
    %v633 = vpop.permute.xlu0 %632
    %s635 = scalar_lea.vmem [#allocation3], 16
    %636 = vst.msk [vmem:[%s635] sm:$0xff] %vm318, %v633
    %v637 = vpack.c.bf16 %v630, %v630
    %639 = vrot.lane.b32.xlu0 %v637, 32
    %v640 = vpop.permute.xlu0 %639
    %v642 = vsel %vm318, %v640, 0
    %644 = vmatprep.subr.bf16.mxu0 0
    %645 = vmatpush1.bf16.msra.mxu0 0
    %646 = vmatprep.subr.bf16.mxu0 0
    %647 = vmatpush1.bf16.msra.mxu0 0
    %648 = vmatprep.subr.bf16.mxu0 0
    %649 = vmatpush1.bf16.msra.mxu0 0
    %650 = vmatprep.subr.bf16.mxu0 0
    %651 = vmatpush1.bf16.msra.mxu0 0
    %652 = vmatprep.subr.bf16.mxu0 0
    %653 = vmatpush1.bf16.msra.mxu0 0
    %654 = vmatprep.subr.bf16.mxu0 0
    %655 = vmatpush1.bf16.msra.mxu0 0
    %656 = vmatprep.subr.bf16.mxu0 0
    %657 = vmatpush1.bf16.msra.mxu0 %v405
    %658 = vmatprep.subr.bf16.mxu0 0
    %659 = vmatpush1.bf16.msra.mxu0 %v404
    %660 = vmatprep.subr.bf16.mxu0 0
    %661 = vmatpush2.bf16.msra.mxu0 0
    %662 = vmatprep.subr.bf16.mxu0 0
    %663 = vmatpush2.bf16.msra.mxu0 0
    %664 = vmatprep.subr.bf16.mxu0 0
    %665 = vmatpush2.bf16.msra.mxu0 0
    %666 = vmatprep.subr.bf16.mxu0 0
    %667 = vmatpush2.bf16.msra.mxu0 0
    %668 = vmatprep.subr.bf16.mxu0 0
    %669 = vmatpush2.bf16.msra.mxu0 0
    %670 = vmatprep.subr.bf16.mxu0 0
    %671 = vmatpush2.bf16.msra.mxu0 0
    %672 = vmatprep.subr.bf16.mxu0 0
    %673 = vmatpush2.bf16.msra.mxu0 0
    %674 = vmatprep.subr.bf16.mxu0 0
    %675 = vmatpush2.bf16.msra.mxu0 0
    %676 = vmatprep.mubr.bf16.mxu0 0
    %677 = vmatmul.mubr.bf16.gmra.mxu0 %v642
    %v678 = vpop.f32.mrf.mxu0
    %v679 = vadd.f32 0.0, %v678
    %v680 = vpop.f32.mrf.mxu0
    %v681 = vpop.f32.mrf.mxu0
    %v682 = vpop.f32.mrf.mxu0
    %683 = vdwg.mxu0
    %v684 = vadd.f32 %v377, %v679
    %v685 = vxor.u32 %v684, 2147483648
    %v686 = vmul.f32 %v685, 1.442695
    %v687 = vpow.pop %v686
    %v688 = vadd.f32 %v687, 1.0
    %v689 = vrcp.pop %v688
    %v690 = vmul.f32 1.0, %v689
    %v691 = vtanh.pop %v684
    %v692 = vmul.f32 %v690, %v624
    %694 = vrot.lane.b32.xlu0 %v691, 64
    %v695 = vpop.permute.xlu0 %694
    %v697 = vmul.f32 %v690, %v695
    %699 = vrot.lane.b32.xlu0 %v697, 32
    %v700 = vpop.permute.xlu0 %699
    %v702 = vadd.f32 %v692, %v700
    %v703 = vtanh.pop %v702
    %705 = vrot.lane.b32.xlu0 %v703, 64
    %v706 = vpop.permute.xlu0 %705
    %v708 = vmul.f32 %v690, %v706
    %710 = vrot.lane.b32.xlu0 %v708, 32
    %v711 = vpop.permute.xlu0 %710
    %s713 = scalar_lea.vmem [#allocation3], 24
    %714 = vst.msk [vmem:[%s713] sm:$0xff] %vm318, %v711
    %v715 = vpack.c.bf16 %v708, %v708
    %717 = vrot.lane.b32.xlu0 %v715, 32
    %v718 = vpop.permute.xlu0 %717
    %v720 = vsel %vm318, %v718, 0
    %722 = vmatprep.subr.bf16.mxu0 0
    %723 = vmatpush1.bf16.msra.mxu0 0
    %724 = vmatprep.subr.bf16.mxu0 0
    %725 = vmatpush1.bf16.msra.mxu0 0
    %726 = vmatprep.subr.bf16.mxu0 0
    %727 = vmatpush1.bf16.msra.mxu0 0
    %728 = vmatprep.subr.bf16.mxu0 0
    %729 = vmatpush1.bf16.msra.mxu0 0
    %730 = vmatprep.subr.bf16.mxu0 0
    %731 = vmatpush1.bf16.msra.mxu0 0
    %732 = vmatprep.subr.bf16.mxu0 0
    %733 = vmatpush1.bf16.msra.mxu0 0
    %734 = vmatprep.subr.bf16.mxu0 0
    %735 = vmatpush1.bf16.msra.mxu0 %v405
    %736 = vmatprep.subr.bf16.mxu0 0
    %737 = vmatpush1.bf16.msra.mxu0 %v404
    %738 = vmatprep.subr.bf16.mxu0 0
    %739 = vmatpush2.bf16.msra.mxu0 0
    %740 = vmatprep.subr.bf16.mxu0 0
    %741 = vmatpush2.bf16.msra.mxu0 0
    %742 = vmatprep.subr.bf16.mxu0 0
    %743 = vmatpush2.bf16.msra.mxu0 0
    %744 = vmatprep.subr.bf16.mxu0 0
    %745 = vmatpush2.bf16.msra.mxu0 0
    %746 = vmatprep.subr.bf16.mxu0 0
    %747 = vmatpush2.bf16.msra.mxu0 0
    %748 = vmatprep.subr.bf16.mxu0 0
    %749 = vmatpush2.bf16.msra.mxu0 0
    %750 = vmatprep.subr.bf16.mxu0 0
    %751 = vmatpush2.bf16.msra.mxu0 0
    %752 = vmatprep.subr.bf16.mxu0 0
    %753 = vmatpush2.bf16.msra.mxu0 0
    %754 = vmatprep.mubr.bf16.mxu0 0
    %755 = vmatmul.mubr.bf16.gmra.mxu0 %v720
    %v756 = vpop.f32.mrf.mxu0
    %v757 = vadd.f32 0.0, %v756
    %v758 = vpop.f32.mrf.mxu0
    %v759 = vpop.f32.mrf.mxu0
    %v760 = vpop.f32.mrf.mxu0
    %761 = vdwg.mxu0
    %v762 = vadd.f32 %v382, %v757
    %v763 = vxor.u32 %v762, 2147483648
    %v764 = vmul.f32 %v763, 1.442695
    %v765 = vpow.pop %v764
    %v766 = vadd.f32 %v765, 1.0
    %v767 = vrcp.pop %v766
    %v768 = vmul.f32 1.0, %v767
    %v769 = vtanh.pop %v762
    %v770 = vmul.f32 %v768, %v702
    %772 = vrot.lane.b32.xlu0 %v769, 64
    %v773 = vpop.permute.xlu0 %772
    %v775 = vmul.f32 %v768, %v773
    %777 = vrot.lane.b32.xlu0 %v775, 32
    %v778 = vpop.permute.xlu0 %777
    %v780 = vadd.f32 %v770, %v778
    %v781 = vtanh.pop %v780
    %783 = vrot.lane.b32.xlu0 %v781, 64
    %v784 = vpop.permute.xlu0 %783
    %v786 = vmul.f32 %v768, %v784
    %788 = vrot.lane.b32.xlu0 %v786, 32
    %v789 = vpop.permute.xlu0 %788
    %s791 = scalar_lea.vmem [#allocation3], 32
    %792 = vst.msk [vmem:[%s791] sm:$0xff] %vm318, %v789
    %v793 = vpack.c.bf16 %v786, %v786
    %795 = vrot.lane.b32.xlu0 %v793, 32
    %v796 = vpop.permute.xlu0 %795
    %v798 = vsel %vm318, %v796, 0
    %800 = vmatprep.subr.bf16.mxu0 0
    %801 = vmatpush1.bf16.msra.mxu0 0
    %802 = vmatprep.subr.bf16.mxu0 0
    %803 = vmatpush1.bf16.msra.mxu0 0
    %804 = vmatprep.subr.bf16.mxu0 0
    %805 = vmatpush1.bf16.msra.mxu0 0
    %806 = vmatprep.subr.bf16.mxu0 0
    %807 = vmatpush1.bf16.msra.mxu0 0
    %808 = vmatprep.subr.bf16.mxu0 0
    %809 = vmatpush1.bf16.msra.mxu0 0
    %810 = vmatprep.subr.bf16.mxu0 0
    %811 = vmatpush1.bf16.msra.mxu0 0
    %812 = vmatprep.subr.bf16.mxu0 0
    %813 = vmatpush1.bf16.msra.mxu0 %v405
    %814 = vmatprep.subr.bf16.mxu0 0
    %815 = vmatpush1.bf16.msra.mxu0 %v404
    %816 = vmatprep.subr.bf16.mxu0 0
    %817 = vmatpush2.bf16.msra.mxu0 0
    %818 = vmatprep.subr.bf16.mxu0 0
    %819 = vmatpush2.bf16.msra.mxu0 0
    %820 = vmatprep.subr.bf16.mxu0 0
    %821 = vmatpush2.bf16.msra.mxu0 0
    %822 = vmatprep.subr.bf16.mxu0 0
    %823 = vmatpush2.bf16.msra.mxu0 0
    %824 = vmatprep.subr.bf16.mxu0 0
    %825 = vmatpush2.bf16.msra.mxu0 0
    %826 = vmatprep.subr.bf16.mxu0 0
    %827 = vmatpush2.bf16.msra.mxu0 0
    %828 = vmatprep.subr.bf16.mxu0 0
    %829 = vmatpush2.bf16.msra.mxu0 0
    %830 = vmatprep.subr.bf16.mxu0 0
    %831 = vmatpush2.bf16.msra.mxu0 0
    %832 = vmatprep.mubr.bf16.mxu0 0
    %833 = vmatmul.mubr.bf16.gmra.mxu0 %v798
    %v834 = vpop.f32.mrf.mxu0
    %v835 = vadd.f32 0.0, %v834
    %v836 = vpop.f32.mrf.mxu0
    %v837 = vpop.f32.mrf.mxu0
    %v838 = vpop.f32.mrf.mxu0
    %839 = vdwg.mxu0
    %v840 = vadd.f32 %v385, %v835
    %v841 = vxor.u32 %v840, 2147483648
    %v842 = vmul.f32 %v841, 1.442695
    %v843 = vpow.pop %v842
    %v844 = vadd.f32 %v843, 1.0
    %v845 = vrcp.pop %v844
    %v846 = vmul.f32 1.0, %v845
    %v847 = vtanh.pop %v840
    %v848 = vmul.f32 %v846, %v780
    %850 = vrot.lane.b32.xlu0 %v847, 64
    %v851 = vpop.permute.xlu0 %850
    %v853 = vmul.f32 %v846, %v851
    %855 = vrot.lane.b32.xlu0 %v853, 32
    %v856 = vpop.permute.xlu0 %855
    %v858 = vadd.f32 %v848, %v856
    %v859 = vtanh.pop %v858
    %861 = vrot.lane.b32.xlu0 %v859, 64
    %v862 = vpop.permute.xlu0 %861
    %v864 = vmul.f32 %v846, %v862
    %866 = vrot.lane.b32.xlu0 %v864, 32
    %v867 = vpop.permute.xlu0 %866
    %s869 = scalar_lea.vmem [#allocation3], 40
    %870 = vst.msk [vmem:[%s869] sm:$0xff] %vm318, %v867
    %v871 = vpack.c.bf16 %v864, %v864
    %873 = vrot.lane.b32.xlu0 %v871, 32
    %v874 = vpop.permute.xlu0 %873
    %v876 = vsel %vm318, %v874, 0
    %878 = vmatprep.subr.bf16.mxu0 0
    %879 = vmatpush1.bf16.msra.mxu0 0
    %880 = vmatprep.subr.bf16.mxu0 0
    %881 = vmatpush1.bf16.msra.mxu0 0
    %882 = vmatprep.subr.bf16.mxu0 0
    %883 = vmatpush1.bf16.msra.mxu0 0
    %884 = vmatprep.subr.bf16.mxu0 0
    %885 = vmatpush1.bf16.msra.mxu0 0
    %886 = vmatprep.subr.bf16.mxu0 0
    %887 = vmatpush1.bf16.msra.mxu0 0
    %888 = vmatprep.subr.bf16.mxu0 0
    %889 = vmatpush1.bf16.msra.mxu0 0
    %890 = vmatprep.subr.bf16.mxu0 0
    %891 = vmatpush1.bf16.msra.mxu0 %v405
    %892 = vmatprep.subr.bf16.mxu0 0
    %893 = vmatpush1.bf16.msra.mxu0 %v404
    %894 = vmatprep.subr.bf16.mxu0 0
    %895 = vmatpush2.bf16.msra.mxu0 0
    %896 = vmatprep.subr.bf16.mxu0 0
    %897 = vmatpush2.bf16.msra.mxu0 0
    %898 = vmatprep.subr.bf16.mxu0 0
    %899 = vmatpush2.bf16.msra.mxu0 0
    %900 = vmatprep.subr.bf16.mxu0 0
    %901 = vmatpush2.bf16.msra.mxu0 0
    %902 = vmatprep.subr.bf16.mxu0 0
    %903 = vmatpush2.bf16.msra.mxu0 0
    %904 = vmatprep.subr.bf16.mxu0 0
    %905 = vmatpush2.bf16.msra.mxu0 0
    %906 = vmatprep.subr.bf16.mxu0 0
    %907 = vmatpush2.bf16.msra.mxu0 0
    %908 = vmatprep.subr.bf16.mxu0 0
    %909 = vmatpush2.bf16.msra.mxu0 0
    %910 = vmatprep.mubr.bf16.mxu0 0
    %911 = vmatmul.mubr.bf16.gmra.mxu0 %v876
    %v912 = vpop.f32.mrf.mxu0
    %v913 = vadd.f32 0.0, %v912
    %v914 = vpop.f32.mrf.mxu0
    %v915 = vpop.f32.mrf.mxu0
    %v916 = vpop.f32.mrf.mxu0
    %917 = vdwg.mxu0
    %v918 = vadd.f32 %v390, %v913
    %v919 = vxor.u32 %v918, 2147483648
    %v920 = vmul.f32 %v919, 1.442695
    %v921 = vpow.pop %v920
    %v922 = vadd.f32 %v921, 1.0
    %v923 = vrcp.pop %v922
    %v924 = vmul.f32 1.0, %v923
    %v925 = vtanh.pop %v918
    %v926 = vmul.f32 %v924, %v858
    %928 = vrot.lane.b32.xlu0 %v925, 64
    %v929 = vpop.permute.xlu0 %928
    %v931 = vmul.f32 %v924, %v929
    %933 = vrot.lane.b32.xlu0 %v931, 32
    %v934 = vpop.permute.xlu0 %933
    %v936 = vadd.f32 %v926, %v934
    %v937 = vtanh.pop %v936
    %939 = vrot.lane.b32.xlu0 %v937, 64
    %v940 = vpop.permute.xlu0 %939
    %v942 = vmul.f32 %v924, %v940
    %944 = vrot.lane.b32.xlu0 %v942, 32
    %v945 = vpop.permute.xlu0 %944
    %s947 = scalar_lea.vmem [#allocation3], 48
    %948 = vst.msk [vmem:[%s947] sm:$0xff] %vm318, %v945
    %v949 = vpack.c.bf16 %v942, %v942
    %951 = vrot.lane.b32.xlu0 %v949, 32
    %v952 = vpop.permute.xlu0 %951
    %v954 = vsel %vm318, %v952, 0
    %956 = vmatprep.subr.bf16.mxu0 0
    %957 = vmatpush1.bf16.msra.mxu0 0
    %958 = vmatprep.subr.bf16.mxu0 0
    %959 = vmatpush1.bf16.msra.mxu0 0
    %960 = vmatprep.subr.bf16.mxu0 0
    %961 = vmatpush1.bf16.msra.mxu0 0
    %962 = vmatprep.subr.bf16.mxu0 0
    %963 = vmatpush1.bf16.msra.mxu0 0
    %964 = vmatprep.subr.bf16.mxu0 0
    %965 = vmatpush1.bf16.msra.mxu0 0
    %966 = vmatprep.subr.bf16.mxu0 0
    %967 = vmatpush1.bf16.msra.mxu0 0
    %968 = vmatprep.subr.bf16.mxu0 0
    %969 = vmatpush1.bf16.msra.mxu0 %v405
    %970 = vmatprep.subr.bf16.mxu0 0
    %971 = vmatpush1.bf16.msra.mxu0 %v404
    %972 = vmatprep.subr.bf16.mxu0 0
    %973 = vmatpush2.bf16.msra.mxu0 0
    %974 = vmatprep.subr.bf16.mxu0 0
    %975 = vmatpush2.bf16.msra.mxu0 0
    %976 = vmatprep.subr.bf16.mxu0 0
    %977 = vmatpush2.bf16.msra.mxu0 0
    %978 = vmatprep.subr.bf16.mxu0 0
    %979 = vmatpush2.bf16.msra.mxu0 0
    %980 = vmatprep.subr.bf16.mxu0 0
    %981 = vmatpush2.bf16.msra.mxu0 0
    %982 = vmatprep.subr.bf16.mxu0 0
    %983 = vmatpush2.bf16.msra.mxu0 0
    %984 = vmatprep.subr.bf16.mxu0 0
    %985 = vmatpush2.bf16.msra.mxu0 0
    %986 = vmatprep.subr.bf16.mxu0 0
    %987 = vmatpush2.bf16.msra.mxu0 0
    %988 = vmatprep.mubr.bf16.mxu0 0
    %989 = vmatmul.mubr.bf16.gmra.mxu0 %v954
    %v990 = vpop.f32.mrf.mxu0
    %v991 = vadd.f32 0.0, %v990
    %v992 = vpop.f32.mrf.mxu0
    %v993 = vpop.f32.mrf.mxu0
    %v994 = vpop.f32.mrf.mxu0
    %995 = vdwg.mxu0
    %v996 = vadd.f32 %v393, %v991
    %v997 = vxor.u32 %v996, 2147483648
    %v998 = vmul.f32 %v997, 1.442695
    %v999 = vpow.pop %v998
    %v1000 = vadd.f32 %v999, 1.0
    %v1001 = vrcp.pop %v1000
    %v1002 = vmul.f32 1.0, %v1001
    %v1003 = vtanh.pop %v996
    %v1004 = vmul.f32 %v1002, %v936
    %1006 = vrot.lane.b32.xlu0 %v1003, 64
    %v1007 = vpop.permute.xlu0 %1006
    %v1009 = vmul.f32 %v1002, %v1007
    %1011 = vrot.lane.b32.xlu0 %v1009, 32
    %v1012 = vpop.permute.xlu0 %1011
    %v1014 = vadd.f32 %v1004, %v1012
    %v1015 = vtanh.pop %v1014
    %1017 = vrot.lane.b32.xlu0 %v1015, 64
    %v1018 = vpop.permute.xlu0 %1017
    %v1020 = vmul.f32 %v1002, %v1018
    %1022 = vrot.lane.b32.xlu0 %v1020, 32
    %v1023 = vpop.permute.xlu0 %1022
    %s1025 = scalar_lea.vmem [#allocation3], 56
    %1026 = vst.msk [vmem:[%s1025] sm:$0xff] %vm318, %v1023
    %1027 = vst.msk [vmem:[#allocation17] sm:$0xff] %vm318, %v1023
    %1029 = vrot.lane.b32.xlu0 %v1014, 96
    %v1030 = vpop.permute.xlu0 %1029
    %1032 = vst.msk [vmem:[#allocation18] sm:$0xff] %vm318, %v1030
    %v1033 = vld [vmem:[#allocation14] sm:$0xf]
    %v1034 = vld [vmem:[#allocation14 + $0x4] sm:$0xf]
    %v1035 = vld [vmem:[#allocation14 + $0x8] sm:$0xf]
    %v1036 = vld [vmem:[#allocation14 + $0xc] sm:$0xf]
    %v1037 = vld [vmem:[#allocation16] sm:$0xf]
    %v1038 = vld [vmem:[#allocation16 + $0x4] sm:$0xf]
    %v1039 = vld [vmem:[#allocation16 + $0x8] sm:$0xf]
    %v1040 = vld [vmem:[#allocation16 + $0xc] sm:$0xf]
    %v1041 = vld [vmem:[%s7] sm:$0x1]
    %v1042 = vld [vmem:[#allocation3] sm:$0xff]
    %v1043 = vld [vmem:[#allocation3 + $0x8] sm:$0xff]
    %v1044 = vld [vmem:[#allocation3 + $0x10] sm:$0xff]
    %v1045 = vld [vmem:[#allocation3 + $0x18] sm:$0xff]
    %v1046 = vld [vmem:[#allocation3 + $0x20] sm:$0xff]
    %v1047 = vld [vmem:[#allocation3 + $0x28] sm:$0xff]
    %v1048 = vld [vmem:[#allocation3 + $0x30] sm:$0xff]
    %v1049 = vld [vmem:[#allocation3 + $0x38] sm:$0xff]
    %s1050 = sld [smem:[#allocation6 + $0x1]]
    %s1051 = smul.u32 %s1050, 2654435761
    %v1052 = vstv %s1051
    %v1053 = vadd.s32 %v150, %v1052
    %v1054 = vadd.s32 %v151, %v1052
    %v1055 = vadd.s32 %v152, %v1052
    %v1056 = vadd.s32 %v153, %v1052
    %v1057 = vadd.s32 %v154, %v1052
    %v1058 = vadd.s32 %v155, %v1052
    %v1059 = vadd.s32 %v156, %v1052
    %v1060 = vadd.s32 %v157, %v1052
    %v1061 = vshrl.u32 %v1053, 16
    %v1062 = vshrl.u32 %v1054, 16
    %v1063 = vshrl.u32 %v1055, 16
    %v1064 = vshrl.u32 %v1056, 16
    %v1065 = vshrl.u32 %v1057, 16
    %v1066 = vshrl.u32 %v1058, 16
    %v1067 = vshrl.u32 %v1059, 16
    %v1068 = vshrl.u32 %v1060, 16
    %v1069 = vxor.u32 %v1053, %v1061
    %v1070 = vxor.u32 %v1054, %v1062
    %v1071 = vxor.u32 %v1055, %v1063
    %v1072 = vxor.u32 %v1056, %v1064
    %v1073 = vxor.u32 %v1057, %v1065
    %v1074 = vxor.u32 %v1058, %v1066
    %v1075 = vxor.u32 %v1059, %v1067
    %v1076 = vxor.u32 %v1060, %v1068
    %v1077 = vmul.u32 %v1069, 2146121005
    %v1078 = vmul.u32 %v1070, 2146121005
    %v1079 = vmul.u32 %v1071, 2146121005
    %v1080 = vmul.u32 %v1072, 2146121005
    %v1081 = vmul.u32 %v1073, 2146121005
    %v1082 = vmul.u32 %v1074, 2146121005
    %v1083 = vmul.u32 %v1075, 2146121005
    %v1084 = vmul.u32 %v1076, 2146121005
    %v1085 = vshrl.u32 %v1077, 15
    %v1086 = vshrl.u32 %v1078, 15
    %v1087 = vshrl.u32 %v1079, 15
    %v1088 = vshrl.u32 %v1080, 15
    %v1089 = vshrl.u32 %v1081, 15
    %v1090 = vshrl.u32 %v1082, 15
    %v1091 = vshrl.u32 %v1083, 15
    %v1092 = vshrl.u32 %v1084, 15
    %v1093 = vxor.u32 %v1077, %v1085
    %v1094 = vxor.u32 %v1078, %v1086
    %v1095 = vxor.u32 %v1079, %v1087
    %v1096 = vxor.u32 %v1080, %v1088
    %v1097 = vxor.u32 %v1081, %v1089
    %v1098 = vxor.u32 %v1082, %v1090
    %v1099 = vxor.u32 %v1083, %v1091
    %v1100 = vxor.u32 %v1084, %v1092
    %v1101 = vmul.u32 %v1093, 2221713035
    %v1102 = vmul.u32 %v1094, 2221713035
    %v1103 = vmul.u32 %v1095, 2221713035
    %v1104 = vmul.u32 %v1096, 2221713035
    %v1105 = vmul.u32 %v1097, 2221713035
    %v1106 = vmul.u32 %v1098, 2221713035
    %v1107 = vmul.u32 %v1099, 2221713035
    %v1108 = vmul.u32 %v1100, 2221713035
    %v1109 = vshrl.u32 %v1101, 16
    %v1110 = vshrl.u32 %v1102, 16
    %v1111 = vshrl.u32 %v1103, 16
    %v1112 = vshrl.u32 %v1104, 16
    %v1113 = vshrl.u32 %v1105, 16
    %v1114 = vshrl.u32 %v1106, 16
    %v1115 = vshrl.u32 %v1107, 16
    %v1116 = vshrl.u32 %v1108, 16
    %v1117 = vxor.u32 %v1101, %v1109
    %v1118 = vxor.u32 %v1102, %v1110
    %v1119 = vxor.u32 %v1103, %v1111
    %v1120 = vxor.u32 %v1104, %v1112
    %v1121 = vxor.u32 %v1105, %v1113
    %v1122 = vxor.u32 %v1106, %v1114
    %v1123 = vxor.u32 %v1107, %v1115
    %v1124 = vxor.u32 %v1108, %v1116
    %v1125 = vand.u32 %v1117, 8388607
    %v1126 = vand.u32 %v1118, 8388607
    %v1127 = vand.u32 %v1119, 8388607
    %v1128 = vand.u32 %v1120, 8388607
    %v1129 = vand.u32 %v1121, 8388607
    %v1130 = vand.u32 %v1122, 8388607
    %v1131 = vand.u32 %v1123, 8388607
    %v1132 = vand.u32 %v1124, 8388607
    %v1133 = vcvt.s32.f32 %v1125
    %v1134 = vcvt.s32.f32 %v1126
    %v1135 = vcvt.s32.f32 %v1127
    %v1136 = vcvt.s32.f32 %v1128
    %v1137 = vcvt.s32.f32 %v1129
    %v1138 = vcvt.s32.f32 %v1130
    %v1139 = vcvt.s32.f32 %v1131
    %v1140 = vcvt.s32.f32 %v1132
    %v1141 = vmul.f32 %v1133, 1.1920929e-07
    %v1142 = vmul.f32 %v1134, 1.1920929e-07
    %v1143 = vmul.f32 %v1135, 1.1920929e-07
    %v1144 = vmul.f32 %v1136, 1.1920929e-07
    %v1145 = vmul.f32 %v1137, 1.1920929e-07
    %v1146 = vmul.f32 %v1138, 1.1920929e-07
    %v1147 = vmul.f32 %v1139, 1.1920929e-07
    %v1148 = vmul.f32 %v1140, 1.1920929e-07
    %vm1149 = vcmp.ge.f32.partialorder %v1141, 0.5
    %vm1150 = vcmp.ge.f32.partialorder %v1142, 0.5
    %vm1151 = vcmp.ge.f32.partialorder %v1143, 0.5
    %vm1152 = vcmp.ge.f32.partialorder %v1144, 0.5
    %vm1153 = vcmp.ge.f32.partialorder %v1145, 0.5
    %vm1154 = vcmp.ge.f32.partialorder %v1146, 0.5
    %vm1155 = vcmp.ge.f32.partialorder %v1147, 0.5
    %vm1156 = vcmp.ge.f32.partialorder %v1148, 0.5
    %v1157 = vsel %vm1149, 1, 0
    %v1158 = vsel %vm1150, 1, 0
    %v1159 = vsel %vm1151, 1, 0
    %v1160 = vsel %vm1152, 1, 0
    %v1161 = vsel %vm1153, 1, 0
    %v1162 = vsel %vm1154, 1, 0
    %v1163 = vsel %vm1155, 1, 0
    %v1164 = vsel %vm1156, 1, 0
    %v1165 = vcvt.s32.f32 %v1157
    %v1166 = vcvt.s32.f32 %v1158
    %v1167 = vcvt.s32.f32 %v1159
    %v1168 = vcvt.s32.f32 %v1160
    %v1169 = vcvt.s32.f32 %v1161
    %v1170 = vcvt.s32.f32 %v1162
    %v1171 = vcvt.s32.f32 %v1163
    %v1172 = vcvt.s32.f32 %v1164
    %v1173 = vmul.f32 %v1042, %v1165
    %v1174 = vmul.f32 %v1043, %v1166
    %v1175 = vmul.f32 %v1044, %v1167
    %v1176 = vmul.f32 %v1045, %v1168
    %v1177 = vmul.f32 %v1046, %v1169
    %v1178 = vmul.f32 %v1047, %v1170
    %v1179 = vmul.f32 %v1048, %v1171
    %v1180 = vmul.f32 %v1049, %v1172
    %v1181 = vmul.f32 %v1173, 2.0
    %v1182 = vmul.f32 %v1174, 2.0
    %v1183 = vmul.f32 %v1175, 2.0
    %v1184 = vmul.f32 %v1176, 2.0
    %v1185 = vmul.f32 %v1177, 2.0
    %v1186 = vmul.f32 %v1178, 2.0
    %v1187 = vmul.f32 %v1179, 2.0
    %v1188 = vmul.f32 %v1180, 2.0
    %v1189 = vpack.c.bf16 %v1182, %v1181
    %v1190 = vpack.c.bf16 %v1184, %v1183
    %v1191 = vpack.c.bf16 %v1186, %v1185
    %v1192 = vpack.c.bf16 %v1188, %v1187
    %v1194 = vlaneseq
    %v1195 = vshrl.u32 %v1194, 7
    %v1196 = vsub.s32 0, %v1195
    %v1197 = vrot.slane %v1041, %v1196
    %v1203 = vunpack.c.l.b16 %v1033
    %v1204 = vunpack.c.l.b16 %v1034
    %v1205 = vunpack.c.l.b16 %v1035
    %v1206 = vunpack.c.l.b16 %v1036
    %v1207 = vpack.c.b16 %v1204, %v1203
    %v1208 = vpack.c.b16 %v1206, %v1205
    %v1212 = vsel %vm318, %v1189, 0
    %v1215 = vsel %vm318, %v1190, 0
    %v1218 = vsel %vm318, %v1191, 0
    %v1221 = vsel %vm318, %v1192, 0
    %1223 = vmatprep.subr.bf16.mxu0 0
    %1224 = vmatpush1.bf16.msra.mxu0 0
    %1225 = vmatprep.subr.bf16.mxu0 0
    %1226 = vmatpush1.bf16.msra.mxu0 0
    %1227 = vmatprep.subr.bf16.mxu0 0
    %1228 = vmatpush1.bf16.msra.mxu0 0
    %1229 = vmatprep.subr.bf16.mxu0 0
    %1230 = vmatpush1.bf16.msra.mxu0 0
    %1231 = vmatprep.subr.bf16.mxu0 0
    %1232 = vmatpush1.bf16.msra.mxu0 0
    %1233 = vmatprep.subr.bf16.mxu0 0
    %1234 = vmatpush1.bf16.msra.mxu0 0
    %1235 = vmatprep.subr.bf16.mxu0 0
    %1236 = vmatpush1.bf16.msra.mxu0 %v1208
    %1237 = vmatprep.subr.bf16.mxu0 0
    %1238 = vmatpush1.bf16.msra.mxu0 %v1207
    %1239 = vmatprep.subr.bf16.mxu0 0
    %1240 = vmatpush2.bf16.msra.mxu0 0
    %1241 = vmatprep.subr.bf16.mxu0 0
    %1242 = vmatpush2.bf16.msra.mxu0 0
    %1243 = vmatprep.subr.bf16.mxu0 0
    %1244 = vmatpush2.bf16.msra.mxu0 0
    %1245 = vmatprep.subr.bf16.mxu0 0
    %1246 = vmatpush2.bf16.msra.mxu0 0
    %1247 = vmatprep.subr.bf16.mxu0 0
    %1248 = vmatpush2.bf16.msra.mxu0 0
    %1249 = vmatprep.subr.bf16.mxu0 0
    %1250 = vmatpush2.bf16.msra.mxu0 0
    %1251 = vmatprep.subr.bf16.mxu0 0
    %1252 = vmatpush2.bf16.msra.mxu0 0
    %1253 = vmatprep.subr.bf16.mxu0 0
    %1254 = vmatpush2.bf16.msra.mxu0 0
    %1255 = vmatprep.mubr.bf16.mxu0 0
    %1256 = vmatmul.mubr.bf16.gmra.mxu0 %v1212
    %v1257 = vpop.f32.mrf.mxu0
    %v1258 = vadd.f32 %v1197, %v1257
    %v1259 = vpop.f32.mrf.mxu0
    %v1260 = vpop.f32.mrf.mxu0
    %v1261 = vadd.f32 %v1197, %v1260
    %v1262 = vpop.f32.mrf.mxu0
    %1263 = vmatprep.mubr.bf16.mxu0 0
    %1264 = vmatmul.mubr.bf16.gmra.mxu0 %v1215
    %v1265 = vpop.f32.mrf.mxu0
    %v1266 = vadd.f32 %v1197, %v1265
    %v1267 = vpop.f32.mrf.mxu0
    %v1268 = vpop.f32.mrf.mxu0
    %v1269 = vadd.f32 %v1197, %v1268
    %v1270 = vpop.f32.mrf.mxu0
    %1271 = vmatprep.mubr.bf16.mxu0 0
    %1272 = vmatmul.mubr.bf16.gmra.mxu0 %v1218
    %v1273 = vpop.f32.mrf.mxu0
    %v1274 = vadd.f32 %v1197, %v1273
    %v1275 = vpop.f32.mrf.mxu0
    %v1276 = vpop.f32.mrf.mxu0
    %v1277 = vadd.f32 %v1197, %v1276
    %v1278 = vpop.f32.mrf.mxu0
    %1279 = vmatprep.mubr.bf16.mxu0 0
    %1280 = vmatmul.mubr.bf16.gmra.mxu0 %v1221
    %v1281 = vpop.f32.mrf.mxu0
    %v1282 = vadd.f32 %v1197, %v1281
    %v1283 = vpop.f32.mrf.mxu0
    %v1284 = vpop.f32.mrf.mxu0
    %v1285 = vadd.f32 %v1197, %v1284
    %v1286 = vpop.f32.mrf.mxu0
    %1287 = vdwg.mxu0
    %v1292 = vunpack.c.l.b16 %v1037
    %v1293 = vunpack.c.l.b16 %v1038
    %v1294 = vunpack.c.l.b16 %v1039
    %v1295 = vunpack.c.l.b16 %v1040
    %v1296 = vpack.c.b16 %v1293, %v1292
    %v1297 = vpack.c.b16 %v1295, %v1294
    %1300 = vmatprep.subr.bf16.mxu0 0
    %1301 = vmatpush1.bf16.msra.mxu0 0
    %1302 = vmatprep.subr.bf16.mxu0 0
    %1303 = vmatpush1.bf16.msra.mxu0 0
    %1304 = vmatprep.subr.bf16.mxu0 0
    %1305 = vmatpush1.bf16.msra.mxu0 0
    %1306 = vmatprep.subr.bf16.mxu0 0
    %1307 = vmatpush1.bf16.msra.mxu0 0
    %1308 = vmatprep.subr.bf16.mxu0 0
    %1309 = vmatpush1.bf16.msra.mxu0 0
    %1310 = vmatprep.subr.bf16.mxu0 0
    %1311 = vmatpush1.bf16.msra.mxu0 0
    %1312 = vmatprep.subr.bf16.mxu0 0
    %1313 = vmatpush1.bf16.msra.mxu0 %v1297
    %1314 = vmatprep.subr.bf16.mxu0 0
    %1315 = vmatpush1.bf16.msra.mxu0 %v1296
    %1316 = vmatprep.subr.bf16.mxu0 0
    %1317 = vmatpush2.bf16.msra.mxu0 0
    %1318 = vmatprep.subr.bf16.mxu0 0
    %1319 = vmatpush2.bf16.msra.mxu0 0
    %1320 = vmatprep.subr.bf16.mxu0 0
    %1321 = vmatpush2.bf16.msra.mxu0 0
    %1322 = vmatprep.subr.bf16.mxu0 0
    %1323 = vmatpush2.bf16.msra.mxu0 0
    %1324 = vmatprep.subr.bf16.mxu0 0
    %1325 = vmatpush2.bf16.msra.mxu0 0
    %1326 = vmatprep.subr.bf16.mxu0 0
    %1327 = vmatpush2.bf16.msra.mxu0 0
    %1328 = vmatprep.subr.bf16.mxu0 0
    %1329 = vmatpush2.bf16.msra.mxu0 0
    %1330 = vmatprep.subr.bf16.mxu0 0
    %1331 = vmatpush2.bf16.msra.mxu0 0
    %1332 = vmatprep.mubr.bf16.mxu0 0
    %1333 = vmatmul.mubr.bf16.gmra.mxu0 %v409
    %v1334 = vpop.f32.mrf.mxu0
    %v1335 = vadd.f32 0.0, %v1334
    %v1336 = vpop.f32.mrf.mxu0
    %v1337 = vpop.f32.mrf.mxu0
    %v1338 = vpop.f32.mrf.mxu0
    %1339 = vdwg.mxu0
    %v1340 = vadd.f32 %v1258, %v1335
    %v1341 = vxor.u32 %v1340, 2147483648
    %v1342 = vmul.f32 %v1341, 1.442695
    %v1343 = vpow.pop %v1342
    %v1344 = vadd.f32 %v1343, 1.0
    %v1345 = vrcp.pop %v1344
    %v1346 = vmul.f32 1.0, %v1345
    %v1347 = vtanh.pop %v1340
    %v1348 = vmul.f32 %v1346, 0.0
    %1350 = vrot.lane.b32.xlu0 %v1347, 64
    %v1351 = vpop.permute.xlu0 %1350
    %v1353 = vmul.f32 %v1346, %v1351
    %1355 = vrot.lane.b32.xlu0 %v1353, 32
    %v1356 = vpop.permute.xlu0 %1355
    %v1358 = vadd.f32 %v1348, %v1356
    %v1359 = vtanh.pop %v1358
    %1361 = vrot.lane.b32.xlu0 %v1359, 64
    %v1362 = vpop.permute.xlu0 %1361
    %v1364 = vmul.f32 %v1346, %v1362
    %v1365 = vpack.c.bf16 %v1364, %v1364
    %1367 = vrot.lane.b32.xlu0 %v1365, 32
    %v1368 = vpop.permute.xlu0 %1367
    %v1370 = vsel %vm318, %v1368, 0
    %1372 = vmatprep.subr.bf16.mxu0 0
    %1373 = vmatpush1.bf16.msra.mxu0 0
    %1374 = vmatprep.subr.bf16.mxu0 0
    %1375 = vmatpush1.bf16.msra.mxu0 0
    %1376 = vmatprep.subr.bf16.mxu0 0
    %1377 = vmatpush1.bf16.msra.mxu0 0
    %1378 = vmatprep.subr.bf16.mxu0 0
    %1379 = vmatpush1.bf16.msra.mxu0 0
    %1380 = vmatprep.subr.bf16.mxu0 0
    %1381 = vmatpush1.bf16.msra.mxu0 0
    %1382 = vmatprep.subr.bf16.mxu0 0
    %1383 = vmatpush1.bf16.msra.mxu0 0
    %1384 = vmatprep.subr.bf16.mxu0 0
    %1385 = vmatpush1.bf16.msra.mxu0 %v1297
    %1386 = vmatprep.subr.bf16.mxu0 0
    %1387 = vmatpush1.bf16.msra.mxu0 %v1296
    %1388 = vmatprep.subr.bf16.mxu0 0
    %1389 = vmatpush2.bf16.msra.mxu0 0
    %1390 = vmatprep.subr.bf16.mxu0 0
    %1391 = vmatpush2.bf16.msra.mxu0 0
    %1392 = vmatprep.subr.bf16.mxu0 0
    %1393 = vmatpush2.bf16.msra.mxu0 0
    %1394 = vmatprep.subr.bf16.mxu0 0
    %1395 = vmatpush2.bf16.msra.mxu0 0
    %1396 = vmatprep.subr.bf16.mxu0 0
    %1397 = vmatpush2.bf16.msra.mxu0 0
    %1398 = vmatprep.subr.bf16.mxu0 0
    %1399 = vmatpush2.bf16.msra.mxu0 0
    %1400 = vmatprep.subr.bf16.mxu0 0
    %1401 = vmatpush2.bf16.msra.mxu0 0
    %1402 = vmatprep.subr.bf16.mxu0 0
    %1403 = vmatpush2.bf16.msra.mxu0 0
    %1404 = vmatprep.mubr.bf16.mxu0 0
    %1405 = vmatmul.mubr.bf16.gmra.mxu0 %v1370
    %v1406 = vpop.f32.mrf.mxu0
    %v1407 = vadd.f32 0.0, %v1406
    %v1408 = vpop.f32.mrf.mxu0
    %v1409 = vpop.f32.mrf.mxu0
    %v1410 = vpop.f32.mrf.mxu0
    %1411 = vdwg.mxu0
    %v1412 = vadd.f32 %v1261, %v1407
    %v1413 = vxor.u32 %v1412, 2147483648
    %v1414 = vmul.f32 %v1413, 1.442695
    %v1415 = vpow.pop %v1414
    %v1416 = vadd.f32 %v1415, 1.0
    %v1417 = vrcp.pop %v1416
    %v1418 = vmul.f32 1.0, %v1417
    %v1419 = vtanh.pop %v1412
    %v1420 = vmul.f32 %v1418, %v1358
    %1422 = vrot.lane.b32.xlu0 %v1419, 64
    %v1423 = vpop.permute.xlu0 %1422
    %v1425 = vmul.f32 %v1418, %v1423
    %1427 = vrot.lane.b32.xlu0 %v1425, 32
    %v1428 = vpop.permute.xlu0 %1427
    %v1430 = vadd.f32 %v1420, %v1428
    %v1431 = vtanh.pop %v1430
    %1433 = vrot.lane.b32.xlu0 %v1431, 64
    %v1434 = vpop.permute.xlu0 %1433
    %v1436 = vmul.f32 %v1418, %v1434
    %v1437 = vpack.c.bf16 %v1436, %v1436
    %1439 = vrot.lane.b32.xlu0 %v1437, 32
    %v1440 = vpop.permute.xlu0 %1439
    %v1442 = vsel %vm318, %v1440, 0
    %1444 = vmatprep.subr.bf16.mxu0 0
    %1445 = vmatpush1.bf16.msra.mxu0 0
    %1446 = vmatprep.subr.bf16.mxu0 0
    %1447 = vmatpush1.bf16.msra.mxu0 0
    %1448 = vmatprep.subr.bf16.mxu0 0
    %1449 = vmatpush1.bf16.msra.mxu0 0
    %1450 = vmatprep.subr.bf16.mxu0 0
    %1451 = vmatpush1.bf16.msra.mxu0 0
    %1452 = vmatprep.subr.bf16.mxu0 0
    %1453 = vmatpush1.bf16.msra.mxu0 0
    %1454 = vmatprep.subr.bf16.mxu0 0
    %1455 = vmatpush1.bf16.msra.mxu0 0
    %1456 = vmatprep.subr.bf16.mxu0 0
    %1457 = vmatpush1.bf16.msra.mxu0 %v1297
    %1458 = vmatprep.subr.bf16.mxu0 0
    %1459 = vmatpush1.bf16.msra.mxu0 %v1296
    %1460 = vmatprep.subr.bf16.mxu0 0
    %1461 = vmatpush2.bf16.msra.mxu0 0
    %1462 = vmatprep.subr.bf16.mxu0 0
    %1463 = vmatpush2.bf16.msra.mxu0 0
    %1464 = vmatprep.subr.bf16.mxu0 0
    %1465 = vmatpush2.bf16.msra.mxu0 0
    %1466 = vmatprep.subr.bf16.mxu0 0
    %1467 = vmatpush2.bf16.msra.mxu0 0
    %1468 = vmatprep.subr.bf16.mxu0 0
    %1469 = vmatpush2.bf16.msra.mxu0 0
    %1470 = vmatprep.subr.bf16.mxu0 0
    %1471 = vmatpush2.bf16.msra.mxu0 0
    %1472 = vmatprep.subr.bf16.mxu0 0
    %1473 = vmatpush2.bf16.msra.mxu0 0
    %1474 = vmatprep.subr.bf16.mxu0 0
    %1475 = vmatpush2.bf16.msra.mxu0 0
    %1476 = vmatprep.mubr.bf16.mxu0 0
    %1477 = vmatmul.mubr.bf16.gmra.mxu0 %v1442
    %v1478 = vpop.f32.mrf.mxu0
    %v1479 = vadd.f32 0.0, %v1478
    %v1480 = vpop.f32.mrf.mxu0
    %v1481 = vpop.f32.mrf.mxu0
    %v1482 = vpop.f32.mrf.mxu0
    %1483 = vdwg.mxu0
    %v1484 = vadd.f32 %v1266, %v1479
    %v1485 = vxor.u32 %v1484, 2147483648
    %v1486 = vmul.f32 %v1485, 1.442695
    %v1487 = vpow.pop %v1486
    %v1488 = vadd.f32 %v1487, 1.0
    %v1489 = vrcp.pop %v1488
    %v1490 = vmul.f32 1.0, %v1489
    %v1491 = vtanh.pop %v1484
    %v1492 = vmul.f32 %v1490, %v1430
    %1494 = vrot.lane.b32.xlu0 %v1491, 64
    %v1495 = vpop.permute.xlu0 %1494
    %v1497 = vmul.f32 %v1490, %v1495
    %1499 = vrot.lane.b32.xlu0 %v1497, 32
    %v1500 = vpop.permute.xlu0 %1499
    %v1502 = vadd.f32 %v1492, %v1500
    %v1503 = vtanh.pop %v1502
    %1505 = vrot.lane.b32.xlu0 %v1503, 64
    %v1506 = vpop.permute.xlu0 %1505
    %v1508 = vmul.f32 %v1490, %v1506
    %v1509 = vpack.c.bf16 %v1508, %v1508
    %1511 = vrot.lane.b32.xlu0 %v1509, 32
    %v1512 = vpop.permute.xlu0 %1511
    %v1514 = vsel %vm318, %v1512, 0
    %1516 = vmatprep.subr.bf16.mxu0 0
    %1517 = vmatpush1.bf16.msra.mxu0 0
    %1518 = vmatprep.subr.bf16.mxu0 0
    %1519 = vmatpush1.bf16.msra.mxu0 0
    %1520 = vmatprep.subr.bf16.mxu0 0
    %1521 = vmatpush1.bf16.msra.mxu0 0
    %1522 = vmatprep.subr.bf16.mxu0 0
    %1523 = vmatpush1.bf16.msra.mxu0 0
    %1524 = vmatprep.subr.bf16.mxu0 0
    %1525 = vmatpush1.bf16.msra.mxu0 0
    %1526 = vmatprep.subr.bf16.mxu0 0
    %1527 = vmatpush1.bf16.msra.mxu0 0
    %1528 = vmatprep.subr.bf16.mxu0 0
    %1529 = vmatpush1.bf16.msra.mxu0 %v1297
    %1530 = vmatprep.subr.bf16.mxu0 0
    %1531 = vmatpush1.bf16.msra.mxu0 %v1296
    %1532 = vmatprep.subr.bf16.mxu0 0
    %1533 = vmatpush2.bf16.msra.mxu0 0
    %1534 = vmatprep.subr.bf16.mxu0 0
    %1535 = vmatpush2.bf16.msra.mxu0 0
    %1536 = vmatprep.subr.bf16.mxu0 0
    %1537 = vmatpush2.bf16.msra.mxu0 0
    %1538 = vmatprep.subr.bf16.mxu0 0
    %1539 = vmatpush2.bf16.msra.mxu0 0
    %1540 = vmatprep.subr.bf16.mxu0 0
    %1541 = vmatpush2.bf16.msra.mxu0 0
    %1542 = vmatprep.subr.bf16.mxu0 0
    %1543 = vmatpush2.bf16.msra.mxu0 0
    %1544 = vmatprep.subr.bf16.mxu0 0
    %1545 = vmatpush2.bf16.msra.mxu0 0
    %1546 = vmatprep.subr.bf16.mxu0 0
    %1547 = vmatpush2.bf16.msra.mxu0 0
    %1548 = vmatprep.mubr.bf16.mxu0 0
    %1549 = vmatmul.mubr.bf16.gmra.mxu0 %v1514
    %v1550 = vpop.f32.mrf.mxu0
    %v1551 = vadd.f32 0.0, %v1550
    %v1552 = vpop.f32.mrf.mxu0
    %v1553 = vpop.f32.mrf.mxu0
    %v1554 = vpop.f32.mrf.mxu0
    %1555 = vdwg.mxu0
    %v1556 = vadd.f32 %v1269, %v1551
    %v1557 = vxor.u32 %v1556, 2147483648
    %v1558 = vmul.f32 %v1557, 1.442695
    %v1559 = vpow.pop %v1558
    %v1560 = vadd.f32 %v1559, 1.0
    %v1561 = vrcp.pop %v1560
    %v1562 = vmul.f32 1.0, %v1561
    %v1563 = vtanh.pop %v1556
    %v1564 = vmul.f32 %v1562, %v1502
    %1566 = vrot.lane.b32.xlu0 %v1563, 64
    %v1567 = vpop.permute.xlu0 %1566
    %v1569 = vmul.f32 %v1562, %v1567
    %1571 = vrot.lane.b32.xlu0 %v1569, 32
    %v1572 = vpop.permute.xlu0 %1571
    %v1574 = vadd.f32 %v1564, %v1572
    %v1575 = vtanh.pop %v1574
    %1577 = vrot.lane.b32.xlu0 %v1575, 64
    %v1578 = vpop.permute.xlu0 %1577
    %v1580 = vmul.f32 %v1562, %v1578
    %v1581 = vpack.c.bf16 %v1580, %v1580
    %1583 = vrot.lane.b32.xlu0 %v1581, 32
    %v1584 = vpop.permute.xlu0 %1583
    %v1586 = vsel %vm318, %v1584, 0
    %1588 = vmatprep.subr.bf16.mxu0 0
    %1589 = vmatpush1.bf16.msra.mxu0 0
    %1590 = vmatprep.subr.bf16.mxu0 0
    %1591 = vmatpush1.bf16.msra.mxu0 0
    %1592 = vmatprep.subr.bf16.mxu0 0
    %1593 = vmatpush1.bf16.msra.mxu0 0
    %1594 = vmatprep.subr.bf16.mxu0 0
    %1595 = vmatpush1.bf16.msra.mxu0 0
    %1596 = vmatprep.subr.bf16.mxu0 0
    %1597 = vmatpush1.bf16.msra.mxu0 0
    %1598 = vmatprep.subr.bf16.mxu0 0
    %1599 = vmatpush1.bf16.msra.mxu0 0
    %1600 = vmatprep.subr.bf16.mxu0 0
    %1601 = vmatpush1.bf16.msra.mxu0 %v1297
    %1602 = vmatprep.subr.bf16.mxu0 0
    %1603 = vmatpush1.bf16.msra.mxu0 %v1296
    %1604 = vmatprep.subr.bf16.mxu0 0
    %1605 = vmatpush2.bf16.msra.mxu0 0
    %1606 = vmatprep.subr.bf16.mxu0 0
    %1607 = vmatpush2.bf16.msra.mxu0 0
    %1608 = vmatprep.subr.bf16.mxu0 0
    %1609 = vmatpush2.bf16.msra.mxu0 0
    %1610 = vmatprep.subr.bf16.mxu0 0
    %1611 = vmatpush2.bf16.msra.mxu0 0
    %1612 = vmatprep.subr.bf16.mxu0 0
    %1613 = vmatpush2.bf16.msra.mxu0 0
    %1614 = vmatprep.subr.bf16.mxu0 0
    %1615 = vmatpush2.bf16.msra.mxu0 0
    %1616 = vmatprep.subr.bf16.mxu0 0
    %1617 = vmatpush2.bf16.msra.mxu0 0
    %1618 = vmatprep.subr.bf16.mxu0 0
    %1619 = vmatpush2.bf16.msra.mxu0 0
    %1620 = vmatprep.mubr.bf16.mxu0 0
    %1621 = vmatmul.mubr.bf16.gmra.mxu0 %v1586
    %v1622 = vpop.f32.mrf.mxu0
    %v1623 = vadd.f32 0.0, %v1622
    %v1624 = vpop.f32.mrf.mxu0
    %v1625 = vpop.f32.mrf.mxu0
    %v1626 = vpop.f32.mrf.mxu0
    %1627 = vdwg.mxu0
    %v1628 = vadd.f32 %v1274, %v1623
    %v1629 = vxor.u32 %v1628, 2147483648
    %v1630 = vmul.f32 %v1629, 1.442695
    %v1631 = vpow.pop %v1630
    %v1632 = vadd.f32 %v1631, 1.0
    %v1633 = vrcp.pop %v1632
    %v1634 = vmul.f32 1.0, %v1633
    %v1635 = vtanh.pop %v1628
    %v1636 = vmul.f32 %v1634, %v1574
    %1638 = vrot.lane.b32.xlu0 %v1635, 64
    %v1639 = vpop.permute.xlu0 %1638
    %v1641 = vmul.f32 %v1634, %v1639
    %1643 = vrot.lane.b32.xlu0 %v1641, 32
    %v1644 = vpop.permute.xlu0 %1643
    %v1646 = vadd.f32 %v1636, %v1644
    %v1647 = vtanh.pop %v1646
    %1649 = vrot.lane.b32.xlu0 %v1647, 64
    %v1650 = vpop.permute.xlu0 %1649
    %v1652 = vmul.f32 %v1634, %v1650
    %v1653 = vpack.c.bf16 %v1652, %v1652
    %1655 = vrot.lane.b32.xlu0 %v1653, 32
    %v1656 = vpop.permute.xlu0 %1655
    %v1658 = vsel %vm318, %v1656, 0
    %1660 = vmatprep.subr.bf16.mxu0 0
    %1661 = vmatpush1.bf16.msra.mxu0 0
    %1662 = vmatprep.subr.bf16.mxu0 0
    %1663 = vmatpush1.bf16.msra.mxu0 0
    %1664 = vmatprep.subr.bf16.mxu0 0
    %1665 = vmatpush1.bf16.msra.mxu0 0
    %1666 = vmatprep.subr.bf16.mxu0 0
    %1667 = vmatpush1.bf16.msra.mxu0 0
    %1668 = vmatprep.subr.bf16.mxu0 0
    %1669 = vmatpush1.bf16.msra.mxu0 0
    %1670 = vmatprep.subr.bf16.mxu0 0
    %1671 = vmatpush1.bf16.msra.mxu0 0
    %1672 = vmatprep.subr.bf16.mxu0 0
    %1673 = vmatpush1.bf16.msra.mxu0 %v1297
    %1674 = vmatprep.subr.bf16.mxu0 0
    %1675 = vmatpush1.bf16.msra.mxu0 %v1296
    %1676 = vmatprep.subr.bf16.mxu0 0
    %1677 = vmatpush2.bf16.msra.mxu0 0
    %1678 = vmatprep.subr.bf16.mxu0 0
    %1679 = vmatpush2.bf16.msra.mxu0 0
    %1680 = vmatprep.subr.bf16.mxu0 0
    %1681 = vmatpush2.bf16.msra.mxu0 0
    %1682 = vmatprep.subr.bf16.mxu0 0
    %1683 = vmatpush2.bf16.msra.mxu0 0
    %1684 = vmatprep.subr.bf16.mxu0 0
    %1685 = vmatpush2.bf16.msra.mxu0 0
    %1686 = vmatprep.subr.bf16.mxu0 0
    %1687 = vmatpush2.bf16.msra.mxu0 0
    %1688 = vmatprep.subr.bf16.mxu0 0
    %1689 = vmatpush2.bf16.msra.mxu0 0
    %1690 = vmatprep.subr.bf16.mxu0 0
    %1691 = vmatpush2.bf16.msra.mxu0 0
    %1692 = vmatprep.mubr.bf16.mxu0 0
    %1693 = vmatmul.mubr.bf16.gmra.mxu0 %v1658
    %v1694 = vpop.f32.mrf.mxu0
    %v1695 = vadd.f32 0.0, %v1694
    %v1696 = vpop.f32.mrf.mxu0
    %v1697 = vpop.f32.mrf.mxu0
    %v1698 = vpop.f32.mrf.mxu0
    %1699 = vdwg.mxu0
    %v1700 = vadd.f32 %v1277, %v1695
    %v1701 = vxor.u32 %v1700, 2147483648
    %v1702 = vmul.f32 %v1701, 1.442695
    %v1703 = vpow.pop %v1702
    %v1704 = vadd.f32 %v1703, 1.0
    %v1705 = vrcp.pop %v1704
    %v1706 = vmul.f32 1.0, %v1705
    %v1707 = vtanh.pop %v1700
    %v1708 = vmul.f32 %v1706, %v1646
    %1710 = vrot.lane.b32.xlu0 %v1707, 64
    %v1711 = vpop.permute.xlu0 %1710
    %v1713 = vmul.f32 %v1706, %v1711
    %1715 = vrot.lane.b32.xlu0 %v1713, 32
    %v1716 = vpop.permute.xlu0 %1715
    %v1718 = vadd.f32 %v1708, %v1716
    %v1719 = vtanh.pop %v1718
    %1721 = vrot.lane.b32.xlu0 %v1719, 64
    %v1722 = vpop.permute.xlu0 %1721
    %v1724 = vmul.f32 %v1706, %v1722
    %v1725 = vpack.c.bf16 %v1724, %v1724
    %1727 = vrot.lane.b32.xlu0 %v1725, 32
    %v1728 = vpop.permute.xlu0 %1727
    %v1730 = vsel %vm318, %v1728, 0
    %1732 = vmatprep.subr.bf16.mxu0 0
    %1733 = vmatpush1.bf16.msra.mxu0 0
    %1734 = vmatprep.subr.bf16.mxu0 0
    %1735 = vmatpush1.bf16.msra.mxu0 0
    %1736 = vmatprep.subr.bf16.mxu0 0
    %1737 = vmatpush1.bf16.msra.mxu0 0
    %1738 = vmatprep.subr.bf16.mxu0 0
    %1739 = vmatpush1.bf16.msra.mxu0 0
    %1740 = vmatprep.subr.bf16.mxu0 0
    %1741 = vmatpush1.bf16.msra.mxu0 0
    %1742 = vmatprep.subr.bf16.mxu0 0
    %1743 = vmatpush1.bf16.msra.mxu0 0
    %1744 = vmatprep.subr.bf16.mxu0 0
    %1745 = vmatpush1.bf16.msra.mxu0 %v1297
    %1746 = vmatprep.subr.bf16.mxu0 0
    %1747 = vmatpush1.bf16.msra.mxu0 %v1296
    %1748 = vmatprep.subr.bf16.mxu0 0
    %1749 = vmatpush2.bf16.msra.mxu0 0
    %1750 = vmatprep.subr.bf16.mxu0 0
    %1751 = vmatpush2.bf16.msra.mxu0 0
    %1752 = vmatprep.subr.bf16.mxu0 0
    %1753 = vmatpush2.bf16.msra.mxu0 0
    %1754 = vmatprep.subr.bf16.mxu0 0
    %1755 = vmatpush2.bf16.msra.mxu0 0
    %1756 = vmatprep.subr.bf16.mxu0 0
    %1757 = vmatpush2.bf16.msra.mxu0 0
    %1758 = vmatprep.subr.bf16.mxu0 0
    %1759 = vmatpush2.bf16.msra.mxu0 0
    %1760 = vmatprep.subr.bf16.mxu0 0
    %1761 = vmatpush2.bf16.msra.mxu0 0
    %1762 = vmatprep.subr.bf16.mxu0 0
    %1763 = vmatpush2.bf16.msra.mxu0 0
    %1764 = vmatprep.mubr.bf16.mxu0 0
    %1765 = vmatmul.mubr.bf16.gmra.mxu0 %v1730
    %v1766 = vpop.f32.mrf.mxu0
    %v1767 = vadd.f32 0.0, %v1766
    %v1768 = vpop.f32.mrf.mxu0
    %v1769 = vpop.f32.mrf.mxu0
    %v1770 = vpop.f32.mrf.mxu0
    %1771 = vdwg.mxu0
    %v1772 = vadd.f32 %v1282, %v1767
    %v1773 = vxor.u32 %v1772, 2147483648
    %v1774 = vmul.f32 %v1773, 1.442695
    %v1775 = vpow.pop %v1774
    %v1776 = vadd.f32 %v1775, 1.0
    %v1777 = vrcp.pop %v1776
    %v1778 = vmul.f32 1.0, %v1777
    %v1779 = vtanh.pop %v1772
    %v1780 = vmul.f32 %v1778, %v1718
    %1782 = vrot.lane.b32.xlu0 %v1779, 64
    %v1783 = vpop.permute.xlu0 %1782
    %v1785 = vmul.f32 %v1778, %v1783
    %1787 = vrot.lane.b32.xlu0 %v1785, 32
    %v1788 = vpop.permute.xlu0 %1787
    %v1790 = vadd.f32 %v1780, %v1788
    %v1791 = vtanh.pop %v1790
    %1793 = vrot.lane.b32.xlu0 %v1791, 64
    %v1794 = vpop.permute.xlu0 %1793
    %v1796 = vmul.f32 %v1778, %v1794
    %v1797 = vpack.c.bf16 %v1796, %v1796
    %1799 = vrot.lane.b32.xlu0 %v1797, 32
    %v1800 = vpop.permute.xlu0 %1799
    %v1802 = vsel %vm318, %v1800, 0
    %1804 = vmatprep.subr.bf16.mxu0 0
    %1805 = vmatpush1.bf16.msra.mxu0 0
    %1806 = vmatprep.subr.bf16.mxu0 0
    %1807 = vmatpush1.bf16.msra.mxu0 0
    %1808 = vmatprep.subr.bf16.mxu0 0
    %1809 = vmatpush1.bf16.msra.mxu0 0
    %1810 = vmatprep.subr.bf16.mxu0 0
    %1811 = vmatpush1.bf16.msra.mxu0 0
    %1812 = vmatprep.subr.bf16.mxu0 0
    %1813 = vmatpush1.bf16.msra.mxu0 0
    %1814 = vmatprep.subr.bf16.mxu0 0
    %1815 = vmatpush1.bf16.msra.mxu0 0
    %1816 = vmatprep.subr.bf16.mxu0 0
    %1817 = vmatpush1.bf16.msra.mxu0 %v1297
    %1818 = vmatprep.subr.bf16.mxu0 0
    %1819 = vmatpush1.bf16.msra.mxu0 %v1296
    %1820 = vmatprep.subr.bf16.mxu0 0
    %1821 = vmatpush2.bf16.msra.mxu0 0
    %1822 = vmatprep.subr.bf16.mxu0 0
    %1823 = vmatpush2.bf16.msra.mxu0 0
    %1824 = vmatprep.subr.bf16.mxu0 0
    %1825 = vmatpush2.bf16.msra.mxu0 0
    %1826 = vmatprep.subr.bf16.mxu0 0
    %1827 = vmatpush2.bf16.msra.mxu0 0
    %1828 = vmatprep.subr.bf16.mxu0 0
    %1829 = vmatpush2.bf16.msra.mxu0 0
    %1830 = vmatprep.subr.bf16.mxu0 0
    %1831 = vmatpush2.bf16.msra.mxu0 0
    %1832 = vmatprep.subr.bf16.mxu0 0
    %1833 = vmatpush2.bf16.msra.mxu0 0
    %1834 = vmatprep.subr.bf16.mxu0 0
    %1835 = vmatpush2.bf16.msra.mxu0 0
    %1836 = vmatprep.mubr.bf16.mxu0 0
    %1837 = vmatmul.mubr.bf16.gmra.mxu0 %v1802
    %v1838 = vpop.f32.mrf.mxu0
    %v1839 = vadd.f32 0.0, %v1838
    %v1840 = vpop.f32.mrf.mxu0
    %v1841 = vpop.f32.mrf.mxu0
    %v1842 = vpop.f32.mrf.mxu0
    %1843 = vdwg.mxu0
    %v1844 = vadd.f32 %v1285, %v1839
    %v1845 = vxor.u32 %v1844, 2147483648
    %v1846 = vmul.f32 %v1845, 1.442695
    %v1847 = vpow.pop %v1846
    %v1848 = vadd.f32 %v1847, 1.0
    %v1849 = vrcp.pop %v1848
    %v1850 = vmul.f32 1.0, %v1849
    %v1851 = vtanh.pop %v1844
    %v1852 = vmul.f32 %v1850, %v1790
    %1854 = vrot.lane.b32.xlu0 %v1851, 64
    %v1855 = vpop.permute.xlu0 %1854
    %v1857 = vmul.f32 %v1850, %v1855
    %1859 = vrot.lane.b32.xlu0 %v1857, 32
    %v1860 = vpop.permute.xlu0 %1859
    %v1862 = vadd.f32 %v1852, %v1860
    %v1863 = vtanh.pop %v1862
    %1865 = vrot.lane.b32.xlu0 %v1863, 64
    %v1866 = vpop.permute.xlu0 %1865
    %v1868 = vmul.f32 %v1850, %v1866
    %1870 = vrot.lane.b32.xlu0 %v1868, 32
    %v1871 = vpop.permute.xlu0 %1870
    %s1873 = scalar_lea.vmem [#allocation17], 8
    %1874 = vst.msk [vmem:[%s1873] sm:$0xff] %vm318, %v1871
    %1876 = vrot.lane.b32.xlu0 %v1862, 96
    %v1877 = vpop.permute.xlu0 %1876
    %s1879 = scalar_lea.vmem [#allocation18], 8
    %1880 = vst.msk [vmem:[%s1879] sm:$0xff] %vm318, %v1877
    // Predicated region
    $region58: #{tpu_custom_call.1} parent=1 // pred_check
      _
    $region59: #{tpu_custom_call.1} parent=1 // pred_check_branch
      %1882 = sbr.rel (0) target = $region61
    $region60: #{tpu_custom_call.1} parent=1 // pred_region
      %s1884 = ssub.s32 256, 256
      %1885 = vsyncadd [#allocation8], %s1884
      %s1886 = sshll.u32 [#allocation17], 4
      %s1887 = int_to_ptr.vmem [resolvable:$true] %s1886
      %1892 = dma.vmem_to_hbm [thread:$0]  %s1887, 256, %s8, [#allocation8], 128, 128, 8
    $region61: #{tpu_custom_call.1} parent=1 // pred_fallthru
      _
    // Predicated region
    $region62: #{tpu_custom_call.1} parent=1 // pred_check
      _
    $region63: #{tpu_custom_call.1} parent=1 // pred_check_branch
      %1894 = sbr.rel (0) target = $region65
    $region64: #{tpu_custom_call.1} parent=1 // pred_region
      %s1896 = ssub.s32 256, 256
      %1897 = vsyncadd [#allocation19], %s1896
      %s1898 = sshll.u32 [#allocation18], 4
      %s1899 = int_to_ptr.vmem [resolvable:$true] %s1898
      %1904 = dma.vmem_to_hbm [thread:$0]  %s1899, 256, %s9, [#allocation19], 128, 128, 8
    $region65: #{tpu_custom_call.1} parent=1 // pred_fallthru
      _
    // Predicated region
    $region66: #{tpu_custom_call.1} parent=1 // pred_check
      _
    $region67: #{tpu_custom_call.1} parent=1 // pred_check_branch
      %1906 = sbr.rel (0) target = $region69
    $region68: #{tpu_custom_call.1} parent=1 // pred_region
      %1907 = dma.done [#allocation8], 256
    $region69: #{tpu_custom_call.1} parent=1 // pred_fallthru
      _
    // Predicated region
    $region70: #{tpu_custom_call.1} parent=1 // pred_check
      _
    $region71: #{tpu_custom_call.1} parent=1 // pred_check_branch
      %1909 = sbr.rel (0) target = $region73
    $region72: #{tpu_custom_call.1} parent=1 // pred_region
      %1910 = dma.done [#allocation19], 256
    $region73: #{tpu_custom_call.1} parent=1 // pred_fallthru
      _
    %1911 = vsyncpa [#allocation7], 1
    %1912 = vsyncpa [#allocation12], 1
    %1913 = vsyncpa [#allocation15], 1
    %1914 = vsyncpa [#allocation8], 1
    %1915 = vsyncpa [#allocation19], 1
    %1916 = vsyncpa [#allocation9], 1

</llo_original>
